<compile_context>
chip_gen: v7x
topology: tpu7x:2x2x1
jax: 0.10.0
libtpu: 0.0.40
codegen_flags: <defaults>
</compile_context>

<pallas_src>
import jax
import jax.numpy as jnp
from jax.experimental import pallas as pl
from jax.experimental.pallas import tpu as pltpu

LANE = 128


def _round_up(n, m):
    return ((n + m - 1) // m) * m


def _pad2d(a, rows, cols, fill=0.0):
    r, c = a.shape
    if r == rows and c == cols:
        return a
    out = jnp.full((rows, cols), fill, dtype=a.dtype)
    return out.at[:r, :c].set(a)


def _vmem_limit_bytes():
    """~3/4 of physical VMEM: 48 MiB on v7x, 96 MiB on v5e/v6e (capped)."""
    try:
        cap = int(pltpu.get_tpu_info().vmem_capacity_bytes)
    except Exception:
        cap = 64 * 1024 * 1024          # conservative fallback (v7x-sized)
    return int(min(cap * 3 // 4, 112 * 1024 * 1024))


def _pick_tiles(N):
    """Return (Np, tm1, tm2, tk).

    Small graphs (N <= 512): one full-array tile, padded to a multiple of 128
    so int8/bf16 layouts stay tile-aligned.
    Large graphs: 512-wide K tiles; the largest row tile that still leaves
    >= 2 row tiles (so v7x megacore can shard the 'parallel' axis). Pass 2
    gets the biggest row tile (tm2) since it re-streams the full (N, 512) h1
    once per row tile.
    """
    if N <= 512:
        Np = _round_up(max(N, 8), LANE)
        return Np, Np, Np, Np
    tk = 512
    Np = _round_up(N, tk)

    def pick(cands):
        for t in cands:
            if Np % t == 0 and Np // t >= 2:
                return t
        return tk

    tm1 = pick((1024, 512))
    tm2 = pick((2048, 1024, 512))
    return Np, tm1, tm2, tk


# ---------------------------------------------------------------------------
# Kernel 1: SAGEConv-1 (mean aggregation) + relu, emits h1 and 1/deg
# ---------------------------------------------------------------------------
def sage1_kernel(adj_ref, xk_ref, xi_ref, ws1_ref, wn1_ref, b1_ref,
                 h1_ref, invdeg_ref, acc_ref, deg_ref):
    k = pl.program_id(1)

    @pl.when(k == 0)
    def _():
        acc_ref[...] = jnp.zeros_like(acc_ref)
        deg_ref[...] = jnp.zeros_like(deg_ref)

    adj32 = adj_ref[...].astype(jnp.float32)       # int8 -> f32 (VPU; mem-bound slack)
    adj = adj32.astype(jnp.bfloat16)               # bf16 MXU operand
    acc_ref[...] += jnp.dot(adj, xk_ref[...], preferred_element_type=jnp.float32)
    deg_ref[...] += jnp.sum(adj32, axis=1, keepdims=True)

    @pl.when(k == pl.num_programs(1) - 1)
    def _():
        inv_deg = 1.0 / jnp.maximum(deg_ref[...], 1.0)     # exact; once per row tile
        h_neigh = (acc_ref[...] * inv_deg).astype(jnp.bfloat16)
        h1 = (jnp.dot(xi_ref[...], ws1_ref[...], preferred_element_type=jnp.float32)
              + jnp.dot(h_neigh, wn1_ref[...], preferred_element_type=jnp.float32)
              + b1_ref[...])
        h1_ref[...] = jnp.maximum(h1, 0.0).astype(h1_ref.dtype)
        invdeg_ref[...] = inv_deg


# ---------------------------------------------------------------------------
# Kernel 2: SAGEConv-2 + relu, fc1 + relu, fc2, softmax (lane-dense head)
# ---------------------------------------------------------------------------
def sage2_head_kernel(adj_ref, hk_ref, hi_ref, invdeg_ref,
                      ws2_ref, wn2_ref, b2_ref,
                      wf1_ref, bf1_ref, wf2_ref, bf2_ref,
                      out_ref, acc_ref):
    k = pl.program_id(1)

    @pl.when(k == 0)
    def _():
        acc_ref[...] = jnp.zeros_like(acc_ref)

    adj = adj_ref[...].astype(jnp.float32).astype(jnp.bfloat16)
    acc_ref[...] += jnp.dot(adj, hk_ref[...], preferred_element_type=jnp.float32)

    @pl.when(k == pl.num_programs(1) - 1)
    def _():
        h_neigh = (acc_ref[...] * invdeg_ref[...]).astype(jnp.bfloat16)
        h2 = (jnp.dot(hi_ref[...], ws2_ref[...], preferred_element_type=jnp.float32)
              + jnp.dot(h_neigh, wn2_ref[...], preferred_element_type=jnp.float32)
              + b2_ref[...])
        h2 = jnp.maximum(h2, 0.0).astype(jnp.bfloat16)

        z = jnp.dot(h2, wf1_ref[...], preferred_element_type=jnp.float32) + bf1_ref[...]
        z = jnp.maximum(z, 0.0).astype(jnp.bfloat16)

        logits = jnp.dot(z, wf2_ref[...], preferred_element_type=jnp.float32) + bf2_ref[...]

        m = jnp.max(logits, axis=1, keepdims=True)
        e = jnp.exp(logits - m)
        out_ref[...] = e / jnp.sum(e, axis=1, keepdims=True)   # exact denominator


# ---------------------------------------------------------------------------
# Wrapper
# ---------------------------------------------------------------------------
def gap_forward(adj, x, params):
    N, F_in = x.shape
    H1 = params["ws1"].shape[1]      # GraphSAGE hidden (512)
    H2 = params["ws2"].shape[1]      # h_feats
    HPart = params["wf1"].shape[1]   # partitioning-module hidden (32)
    P = params["wf2"].shape[1]       # num partitions

    # lane-dense padded widths (all feature dims -> multiples of 128)
    Fp = _round_up(max(F_in, LANE), LANE)
    H1p = _round_up(max(H1, LANE), LANE)
    H2p = _round_up(max(H2, LANE), LANE)
    HPp = _round_up(max(HPart, LANE), LANE)
    PP = _round_up(max(P, LANE), LANE)

    Np, tm1, tm2, tk = _pick_tiles(N)

    # ---- operand prep ----
    adj_p = _pad2d(adj, Np, Np).astype(jnp.int8)         # binary graph: exact in int8
    x_p = _pad2d(x, Np, Fp).astype(jnp.bfloat16)

    ws1 = _pad2d(params["ws1"], Fp, H1p).astype(jnp.bfloat16)
    wn1 = _pad2d(params["wn1"], Fp, H1p).astype(jnp.bfloat16)
    b1 = _pad2d(params["b1"].reshape(1, H1), 1, H1p).astype(jnp.float32)

    ws2 = _pad2d(params["ws2"], H1p, H2p).astype(jnp.bfloat16)
    wn2 = _pad2d(params["wn2"], H1p, H2p).astype(jnp.bfloat16)
    b2 = _pad2d(params["b2"].reshape(1, H2), 1, H2p).astype(jnp.float32)

    wf1 = _pad2d(params["wf1"], H2p, HPp).astype(jnp.bfloat16)   # rows = h_feats (padded)
    bf1 = _pad2d(params["bf1"].reshape(1, HPart), 1, HPp).astype(jnp.float32)
    wf2 = _pad2d(params["wf2"], HPp, PP).astype(jnp.bfloat16)
    bf2 = _pad2d(params["bf2"].reshape(1, P), 1, PP,
                 fill=-1e30).astype(jnp.float32)                 # padded logits -> ~-inf

    cparams = pltpu.CompilerParams(
        dimension_semantics=("parallel", "arbitrary"),
        vmem_limit_bytes=_vmem_limit_bytes())

    # ---- pass 1: SAGEConv-1 -> h1 (bf16) + 1/deg ----
    h1, inv_deg = pl.pallas_call(
        sage1_kernel,
        out_shape=(jax.ShapeDtypeStruct((Np, H1p), jnp.bfloat16),
                   jax.ShapeDtypeStruct((Np, 1), jnp.float32)),
        grid=(Np // tm1, Np // tk),
        in_specs=[
            pl.BlockSpec((tm1, tk), lambda i, k: (i, k)),       # adjacency tile (int8)
            pl.BlockSpec((tk, Fp), lambda i, k: (k, 0)),        # neighbor feats
            pl.BlockSpec((tm1, Fp), lambda i, k: (i, 0)),       # self feats
            pl.BlockSpec((Fp, H1p), lambda i, k: (0, 0)),       # W_self
            pl.BlockSpec((Fp, H1p), lambda i, k: (0, 0)),       # W_neigh
            pl.BlockSpec((1, H1p), lambda i, k: (0, 0)),        # bias
        ],
        out_specs=(pl.BlockSpec((tm1, H1p), lambda i, k: (i, 0)),
                   pl.BlockSpec((tm1, 1), lambda i, k: (i, 0))),
        scratch_shapes=[pltpu.VMEM((tm1, Fp), jnp.float32),     # A@X accumulator
                        pltpu.VMEM((tm1, 1), jnp.float32)],     # in-degree
        compiler_params=cparams,
    )(adj_p, x_p, x_p, ws1, wn1, b1)

    # ---- pass 2: SAGEConv-2 + partitioning head -> lane-dense (Np, PP) probs ----
    probs = pl.pallas_call(
        sage2_head_kernel,
        out_shape=jax.ShapeDtypeStruct((Np, PP), jnp.float32),
        grid=(Np // tm2, Np // tk),
        in_specs=[
            pl.BlockSpec((tm2, tk), lambda i, k: (i, k)),       # adjacency tile (int8)
            pl.BlockSpec((tk, H1p), lambda i, k: (k, 0)),       # neighbor h1
            pl.BlockSpec((tm2, H1p), lambda i, k: (i, 0)),      # self h1
            pl.BlockSpec((tm2, 1), lambda i, k: (i, 0)),        # 1/deg from pass 1
            pl.BlockSpec((H1p, H2p), lambda i, k: (0, 0)),      # W_self
            pl.BlockSpec((H1p, H2p), lambda i, k: (0, 0)),      # W_neigh
            pl.BlockSpec((1, H2p), lambda i, k: (0, 0)),        # bias2
            pl.BlockSpec((H2p, HPp), lambda i, k: (0, 0)),      # fc1 W (padded)
            pl.BlockSpec((1, HPp), lambda i, k: (0, 0)),        # fc1 b (padded)
            pl.BlockSpec((HPp, PP), lambda i, k: (0, 0)),       # fc2 W (padded)
            pl.BlockSpec((1, PP), lambda i, k: (0, 0)),         # fc2 b (padded)
        ],
        out_specs=pl.BlockSpec((tm2, PP), lambda i, k: (i, 0)),
        scratch_shapes=[pltpu.VMEM((tm2, H1p), jnp.float32)],   # A@h1 accumulator
        compiler_params=cparams,
    )(adj_p, h1, h1, inv_deg, ws2, wn2, b2, wf1, bf1, wf2, bf2)

    return probs[:N, :P]


# ---------------------------------------------------------------------------
# Parameters & pure-JAX reference
# ---------------------------------------------------------------------------
def init_params(key, in_feats, h_feats, num_partitions, sage_hidden=512, part_hidden=32):
    ks = jax.random.split(key, 12)

    def lin(k, fan_in, fan_out):
        return 0.1 * jax.random.normal(k, (fan_in, fan_out), dtype=jnp.float32)

    return {
        # SAGEConv 1: in_feats -> sage_hidden
        "ws1": lin(ks[0], in_feats, sage_hidden),
        "wn1": lin(ks[1], in_feats, sage_hidden),
        "b1": 0.01 * jax.random.normal(ks[2], (1, sage_hidden), dtype=jnp.float32),
        # SAGEConv 2: sage_hidden -> h_feats
        "ws2": lin(ks[3], sage_hidden, h_feats),
        "wn2": lin(ks[4], sage_hidden, h_feats),
        "b2": 0.01 * jax.random.normal(ks[5], (1, h_feats), dtype=jnp.float32),
        # PartitioningModule fc1: h_feats -> part_hidden
        "wf1": lin(ks[6], h_feats, part_hidden),
        "bf1": 0.01 * jax.random.normal(ks[7], (1, part_hidden), dtype=jnp.float32),
        # PartitioningModule fc2: part_hidden -> num_partitions
        "wf2": lin(ks[8], part_hidden, num_partitions),
        "bf2": 0.01 * jax.random.normal(ks[9], (1, num_partitions), dtype=jnp.float32),
    }


def reference_forward(adj, x, p):
    deg_inv = 1.0 / jnp.maximum(jnp.sum(adj, axis=1, keepdims=True), 1.0)
    hn1 = (adj @ x) * deg_inv
    h1 = jax.nn.relu(x @ p["ws1"] + hn1 @ p["wn1"] + p["b1"])
    hn2 = (adj @ h1) * deg_inv
    h2 = jax.nn.relu(h1 @ p["ws2"] + hn2 @ p["wn2"] + p["b2"])
    z = jax.nn.relu(h2 @ p["wf1"] + p["bf1"])
    logits = z @ p["wf2"] + p["bf2"]
    return jax.nn.softmax(logits, axis=1)


def _make_graph(key, n, in_feats):
    k_adj, k_x = jax.random.split(key)
    adj = (jax.random.uniform(k_adj, (n, n)) < 0.3).astype(jnp.float32)
    adj = adj * (1.0 - jnp.eye(n, dtype=jnp.float32))        # no self-loops
    feats = jax.random.normal(k_x, (n, in_feats), dtype=jnp.float32)
    return adj, feats


if __name__ == "__main__":
    IN_FEATS = 16
    H_FEATS = 32
    NUM_PARTS = 4

    key = jax.random.PRNGKey(0)
    k_g1, k_g2, k_p = jax.random.split(key, 3)
    params = init_params(k_p, IN_FEATS, H_FEATS, NUM_PARTS)

    # --- small graph: single-tile (full-block) path ---
    N1 = 16
    adj1, x1 = _make_graph(k_g1, N1, IN_FEATS)
    probs1 = jax.block_until_ready(gap_forward(adj1, x1, params))
    ref1 = reference_forward(adj1, x1, params)
    assert probs1.shape == (N1, NUM_PARTS)
    assert jnp.allclose(jnp.sum(probs1, axis=1), 1.0, atol=1e-4)
    assert jnp.allclose(probs1, ref1, atol=2e-2, rtol=1e-2), float(
        jnp.max(jnp.abs(probs1 - ref1)))

    # --- larger graph: exercises the tiled / multi-row-tile path ---
    N2 = 600
    adj2, x2 = _make_graph(k_g2, N2, IN_FEATS)
    probs2 = jax.block_until_ready(gap_forward(adj2, x2, params))
    ref2 = reference_forward(adj2, x2, params)
    assert probs2.shape == (N2, NUM_PARTS)
    assert jnp.allclose(jnp.sum(probs2, axis=1), 1.0, atol=1e-4)
    assert jnp.allclose(probs2, ref2, atol=2e-2, rtol=1e-2), float(
        jnp.max(jnp.abs(probs2 - ref2)))

    print("KERNEL_OK")
</pallas_src>

<mosaic_0001>
module attributes {stable_mosaic.version = 11 : i64} {
  func.func @sage1_kernel(%arg0: i32, %arg1: i32, %arg2: memref<128x128xi8, #tpu.memory_space<vmem>>, %arg3: memref<128x128xbf16, #tpu.memory_space<vmem>>, %arg4: memref<128x128xbf16, #tpu.memory_space<vmem>>, %arg5: memref<128x512xbf16, #tpu.memory_space<vmem>>, %arg6: memref<128x512xbf16, #tpu.memory_space<vmem>>, %arg7: memref<1x512xf32, #tpu.memory_space<vmem>>, %arg8: memref<128x512xbf16, #tpu.memory_space<vmem>>, %arg9: memref<128x1xf32, #tpu.memory_space<vmem>>, %arg10: memref<128x128xf32, #tpu.memory_space<vmem>>, %arg11: memref<128x1xf32, #tpu.memory_space<vmem>>) attributes {dimension_semantics = [#tpu.dimension_semantics<parallel>, #tpu.dimension_semantics<arbitrary>], iteration_bounds = array<i64: 1, 1>, scalar_prefetch = 0 : i64, scratch_operands = 2 : i64, tpu.core_type = #tpu.core_type<tc>, window_params = [{transform_indices = @transform_0, window_bounds = array<i64: 128, 128>}, {transform_indices = @transform_1, window_bounds = array<i64: 128, 128>}, {transform_indices = @transform_2, window_bounds = array<i64: 128, 128>}, {pipeline_mode = #tpu.pipeline_mode<synchronous>, transform_indices = @transform_3, window_bounds = array<i64: 128, 512>}, {pipeline_mode = #tpu.pipeline_mode<synchronous>, transform_indices = @transform_4, window_bounds = array<i64: 128, 512>}, {pipeline_mode = #tpu.pipeline_mode<synchronous>, transform_indices = @transform_5, window_bounds = array<i64: 1, 512>}, {transform_indices = @transform_6, window_bounds = array<i64: 128, 512>}, {transform_indices = @transform_7, window_bounds = array<i64: 128, 1>}]} {
    %c0_i32 = arith.constant 0 : i32
    %0 = arith.cmpi eq, %arg1, %c0_i32 : i32
    %1 = arith.extui %0 : i1 to i32
    %c0_i32_0 = arith.constant 0 : i32
    %2 = arith.cmpi ne, %1, %c0_i32_0 : i32
    scf.if %2 {
      %cst_15 = arith.constant 0.000000e+00 : f32
      %19 = vector.broadcast %cst_15 : f32 to vector<128x128xf32>
      %c0_16 = arith.constant 0 : index
      %c0_17 = arith.constant 0 : index
      %20 = vector.load %arg10[%c0_16, %c0_17] : memref<128x128xf32, #tpu.memory_space<vmem>>, vector<128x128xf32>
      tpu.vector_store %arg10[%c0_16, %c0_17], %19 {strides = array<i32>} : memref<128x128xf32, #tpu.memory_space<vmem>>, vector<128x128xf32>,
      %cst_18 = arith.constant 0.000000e+00 : f32
      %21 = vector.broadcast %cst_18 : f32 to vector<128x1xf32>
      %c0_19 = arith.constant 0 : index
      %c0_20 = arith.constant 0 : index
      %22 = vector.load %arg11[%c0_19, %c0_20] : memref<128x1xf32, #tpu.memory_space<vmem>>, vector<128x1xf32>
      tpu.vector_store %arg11[%c0_19, %c0_20], %21 {strides = array<i32>} : memref<128x1xf32, #tpu.memory_space<vmem>>, vector<128x1xf32>,
    } else {
    }
    %c0 = arith.constant 0 : index
    %c0_1 = arith.constant 0 : index
    %3 = vector.load %arg2[%c0, %c0_1] : memref<128x128xi8, #tpu.memory_space<vmem>>, vector<128x128xi8>
    %4 = arith.sitofp %3 : vector<128x128xi8> to vector<128x128xf32>
    %5 = arith.truncf %4 : vector<128x128xf32> to vector<128x128xbf16>
    %c0_2 = arith.constant 0 : index
    %c0_3 = arith.constant 0 : index
    %6 = vector.load %arg10[%c0_2, %c0_3] : memref<128x128xf32, #tpu.memory_space<vmem>>, vector<128x128xf32>
    %c0_4 = arith.constant 0 : index
    %c0_5 = arith.constant 0 : index
    %7 = vector.load %arg3[%c0_4, %c0_5] : memref<128x128xbf16, #tpu.memory_space<vmem>>, vector<128x128xbf16>
    %cst = arith.constant dense<0.000000e+00> : vector<128x128xf32>
    %8 = tpu.matmul %5, %7, %cst {dimension_numbers = #tpu.dot_dimension_numbers<[1], [0], [0], [1], [0, 0, 1, 1], [], []>} : vector<128x128xbf16>, vector<128x128xbf16>, vector<128x128xf32> -> vector<128x128xf32>
    %9 = arith.addf %6, %8 : vector<128x128xf32>
    %c0_6 = arith.constant 0 : index
    %c0_7 = arith.constant 0 : index
    %10 = vector.load %arg10[%c0_6, %c0_7] : memref<128x128xf32, #tpu.memory_space<vmem>>, vector<128x128xf32>
    tpu.vector_store %arg10[%c0_6, %c0_7], %9 {strides = array<i32>} : memref<128x128xf32, #tpu.memory_space<vmem>>, vector<128x128xf32>,
    %c0_8 = arith.constant 0 : index
    %c0_9 = arith.constant 0 : index
    %11 = vector.load %arg11[%c0_8, %c0_9] : memref<128x1xf32, #tpu.memory_space<vmem>>, vector<128x1xf32>
    %cst_10 = arith.constant dense<0.000000e+00> : vector<128xf32>
    %12 = vector.multi_reduction <add>, %4, %cst_10 [1] : vector<128x128xf32> to vector<128xf32>
    %13 = vector.shape_cast %12 : vector<128xf32> to vector<128x1xf32>
    %14 = arith.addf %11, %13 : vector<128x1xf32>
    %c0_11 = arith.constant 0 : index
    %c0_12 = arith.constant 0 : index
    %15 = vector.load %arg11[%c0_11, %c0_12] : memref<128x1xf32, #tpu.memory_space<vmem>>, vector<128x1xf32>
    tpu.vector_store %arg11[%c0_11, %c0_12], %14 {strides = array<i32>} : memref<128x1xf32, #tpu.memory_space<vmem>>, vector<128x1xf32>,
    %c0_i32_13 = arith.constant 0 : i32
    %16 = arith.cmpi eq, %arg1, %c0_i32_13 : i32
    %17 = arith.extui %16 : i1 to i32
    %c0_i32_14 = arith.constant 0 : i32
    %18 = arith.cmpi ne, %17, %c0_i32_14 : i32
    scf.if %18 {
      %c0_15 = arith.constant 0 : index
      %c0_16 = arith.constant 0 : index
      %19 = vector.load %arg11[%c0_15, %c0_16] : memref<128x1xf32, #tpu.memory_space<vmem>>, vector<128x1xf32>
      %cst_17 = arith.constant 1.000000e+00 : f32
      %20 = vector.broadcast %cst_17 : f32 to vector<128x1xf32>
      %21 = arith.maximumf %19, %20 : vector<128x1xf32>
      %cst_18 = arith.constant 1.000000e+00 : f32
      %22 = vector.broadcast %cst_18 : f32 to vector<128x1xf32>
      %23 = arith.divf %22, %21 : vector<128x1xf32>
      %c0_19 = arith.constant 0 : index
      %c0_20 = arith.constant 0 : index
      %24 = vector.load %arg10[%c0_19, %c0_20] : memref<128x128xf32, #tpu.memory_space<vmem>>, vector<128x128xf32>
      %25 = vector.broadcast %23 : vector<128x1xf32> to vector<128x128xf32>
      %26 = arith.mulf %24, %25 : vector<128x128xf32>
      %27 = arith.truncf %26 : vector<128x128xf32> to vector<128x128xbf16>
      %c0_21 = arith.constant 0 : index
      %c0_22 = arith.constant 0 : index
      %28 = vector.load %arg4[%c0_21, %c0_22] : memref<128x128xbf16, #tpu.memory_space<vmem>>, vector<128x128xbf16>
      %c0_23 = arith.constant 0 : index
      %c0_24 = arith.constant 0 : index
      %29 = vector.load %arg5[%c0_23, %c0_24] : memref<128x512xbf16, #tpu.memory_space<vmem>>, vector<128x512xbf16>
      %cst_25 = arith.constant dense<0.000000e+00> : vector<128x512xf32>
      %30 = tpu.matmul %28, %29, %cst_25 {dimension_numbers = #tpu.dot_dimension_numbers<[1], [0], [0], [1], [0, 0, 1, 1], [], []>} : vector<128x128xbf16>, vector<128x512xbf16>, vector<128x512xf32> -> vector<128x512xf32>
      %c0_26 = arith.constant 0 : index
      %c0_27 = arith.constant 0 : index
      %31 = vector.load %arg6[%c0_26, %c0_27] : memref<128x512xbf16, #tpu.memory_space<vmem>>, vector<128x512xbf16>
      %cst_28 = arith.constant dense<0.000000e+00> : vector<128x512xf32>
      %32 = tpu.matmul %27, %31, %cst_28 {dimension_numbers = #tpu.dot_dimension_numbers<[1], [0], [0], [1], [0, 0, 1, 1], [], []>} : vector<128x128xbf16>, vector<128x512xbf16>, vector<128x512xf32> -> vector<128x512xf32>
      %33 = arith.addf %30, %32 : vector<128x512xf32>
      %c0_29 = arith.constant 0 : index
      %c0_30 = arith.constant 0 : index
      %34 = vector.load %arg7[%c0_29, %c0_30] : memref<1x512xf32, #tpu.memory_space<vmem>>, vector<1x512xf32>
      %35 = vector.broadcast %34 : vector<1x512xf32> to vector<128x512xf32>
      %36 = arith.addf %33, %35 : vector<128x512xf32>
      %cst_31 = arith.constant 0.000000e+00 : f32
      %37 = vector.broadcast %cst_31 : f32 to vector<128x512xf32>
      %38 = arith.maximumf %36, %37 : vector<128x512xf32>
      %39 = arith.truncf %38 : vector<128x512xf32> to vector<128x512xbf16>
      %c0_32 = arith.constant 0 : index
      %c0_33 = arith.constant 0 : index
      %40 = vector.load %arg8[%c0_32, %c0_33] : memref<128x512xbf16, #tpu.memory_space<vmem>>, vector<128x512xbf16>
      tpu.vector_store %arg8[%c0_32, %c0_33], %39 {strides = array<i32>} : memref<128x512xbf16, #tpu.memory_space<vmem>>, vector<128x512xbf16>,
      %c0_34 = arith.constant 0 : index
      %c0_35 = arith.constant 0 : index
      %41 = vector.load %arg9[%c0_34, %c0_35] : memref<128x1xf32, #tpu.memory_space<vmem>>, vector<128x1xf32>
      tpu.vector_store %arg9[%c0_34, %c0_35], %23 {strides = array<i32>} : memref<128x1xf32, #tpu.memory_space<vmem>>, vector<128x1xf32>,
    } else {
    }
    return
  }
  func.func @transform_0(%arg0: i32, %arg1: i32) -> (i32, i32) {
    %c0_i32 = arith.constant 0 : i32
    return %arg0, %arg1 : i32, i32
  }
  func.func @transform_1(%arg0: i32, %arg1: i32) -> (i32, i32) {
    %c0_i32 = arith.constant 0 : i32
    %c0_i32_0 = arith.constant 0 : i32
    return %arg1, %c0_i32 : i32, i32
  }
  func.func @transform_2(%arg0: i32, %arg1: i32) -> (i32, i32) {
    %c0_i32 = arith.constant 0 : i32
    %c0_i32_0 = arith.constant 0 : i32
    return %arg0, %c0_i32 : i32, i32
  }
  func.func @transform_3(%arg0: i32, %arg1: i32) -> (i32, i32) {
    %c0_i32 = arith.constant 0 : i32
    %c0_i32_0 = arith.constant 0 : i32
    %c0_i32_1 = arith.constant 0 : i32
    return %c0_i32, %c0_i32_0 : i32, i32
  }
  func.func @transform_4(%arg0: i32, %arg1: i32) -> (i32, i32) {
    %c0_i32 = arith.constant 0 : i32
    %c0_i32_0 = arith.constant 0 : i32
    %c0_i32_1 = arith.constant 0 : i32
    return %c0_i32, %c0_i32_0 : i32, i32
  }
  func.func @transform_5(%arg0: i32, %arg1: i32) -> (i32, i32) {
    %c0_i32 = arith.constant 0 : i32
    %c0_i32_0 = arith.constant 0 : i32
    %c0_i32_1 = arith.constant 0 : i32
    return %c0_i32, %c0_i32_0 : i32, i32
  }
  func.func @transform_6(%arg0: i32, %arg1: i32) -> (i32, i32) {
    %c0_i32 = arith.constant 0 : i32
    %c0_i32_0 = arith.constant 0 : i32
    return %arg0, %c0_i32 : i32, i32
  }
  func.func @transform_7(%arg0: i32, %arg1: i32) -> (i32, i32) {
    %c0_i32 = arith.constant 0 : i32
    %c0_i32_0 = arith.constant 0 : i32
    return %arg0, %c0_i32 : i32, i32
  }
}

</mosaic_0001>

<llo_original>
// kernel: tpu_custom_call.1
$region0: #{tpu_custom_call.1}
  #allocation0 [shape = 'u32[]', space=smem, size = 0x4, offset = 0x4, fixed_abs, tag = 'smem constant byte address 0x4 - core index']
  #allocation1 [shape = 'u32[144,128]{1,0:T(1,128)}', space=vmem, size = 0x12000, scoped, tag = 'internal scratch']
  #allocation2 [shape = 'f32[128,128]{1,0:T(8,128)}', space=vmem, size = 0x10000, scoped, tag = 'scratch operand']
  #allocation3 [shape = 'f32[128,1]{1,0:T(8,128)}', space=vmem, size = 0x10000, scoped, tag = 'scratch operand']
  %s0 = inlined_call_operand.hbm [shape: s8[128,128], index: 0, kind: input, shape index: {}]
  %s1 = inlined_call_operand.hbm [shape: bf16[128,128], index: 1, kind: input, shape index: {}]
  %s2 = inlined_call_operand.hbm [shape: bf16[128,128], index: 2, kind: input, shape index: {}]
  %s3 = inlined_call_operand.hbm [shape: bf16[128,512], index: 3, kind: input, shape index: {}]
  %s4 = inlined_call_operand.hbm [shape: bf16[128,512], index: 4, kind: input, shape index: {}]
  %s5 = inlined_call_operand.vmem [shape: f32[1,512], index: 5, kind: input, shape index: {}]
  %s6 = inlined_call_operand.hbm [shape: bf16[128,512], index: 6, kind: output, shape index: {0}]
  %s7 = inlined_call_operand.vmem [shape: f32[128,1], index: 7, kind: output, shape index: {1}]
  %8 = xla_tuple %s6, %s7
  %s9 = sld [smem:[#allocation0]]
  $region70: #{tpu_custom_call.1} parent=0
    _
  %s11 = ssub.s32 1, %s9
  %s12 = scalar_select 0, %s11, %s9
  $region1: #{tpu_custom_call.1} parent=0
    #allocation4 [shape = 'u8[16384]{0}', space=vmem, size = 0x4000, scoped, tag = 'input window, operand 0, single buffered']
    #allocation5 [shape = 's32[1]{0}', space=sflag, size = 0x4, scoped, tag = 'scoped memory for tpu_custom_call.1']
    #allocation6 [shape = 's32[1]{0}', space=sflag, size = 0x4, scoped, tag = 'scoped memory for tpu_custom_call.1']
    #allocation7 [shape = 'u8[32768]{0}', space=vmem, size = 0x8000, scoped, tag = 'input window, operand 1, single buffered']
    #allocation8 [shape = 's32[1]{0}', space=sflag, size = 0x4, scoped, tag = 'scoped memory for tpu_custom_call.1']
    #allocation9 [shape = 'u8[32768]{0}', space=vmem, size = 0x8000, scoped, tag = 'input window, operand 2, single buffered']
    #allocation10 [shape = 'u8[131072]{0}', space=vmem, size = 0x20000, scoped, tag = 'input window, operand 3, single buffered']
    #allocation11 [shape = 's32[1]{0}', space=sflag, size = 0x4, scoped, tag = 'scoped memory for tpu_custom_call.1']
    #allocation12 [shape = 'u8[131072]{0}', space=vmem, size = 0x20000, scoped, tag = 'input window, operand 4, single buffered']
    #allocation13 [shape = 'u8[131072]{0}', space=vmem, size = 0x20000, scoped, tag = 'output window, operand 0, single buffered']
    %13 = vsyncpa [#allocation5], 0
    %14 = vsyncpa [#allocation8], 0
    %15 = vsyncpa [#allocation11], 0
    %16 = vsyncpa [#allocation6], 0
    // Predicated region
    $region2: #{tpu_custom_call.1} parent=1 // pred_check
      _
    $region3: #{tpu_custom_call.1} parent=1 // pred_check_branch
      %18 = sbr.rel (0) target = $region5
    $region4: #{tpu_custom_call.1} parent=1 // pred_region
      %s20 = ssub.s32 512, 512
      %21 = vsyncadd [#allocation5], %s20
      %s22 = sshll.u32 [#allocation4], 4
      %s23 = int_to_ptr.vmem [resolvable:$true] %s22
      %28 = dma.hbm_to_vmem [thread:$0]  %s0, 512, %s23, [#allocation5], 128, 128, 8
    $region5: #{tpu_custom_call.1} parent=1 // pred_fallthru
      _
    // Predicated region
    $region6: #{tpu_custom_call.1} parent=1 // pred_check
      _
    $region7: #{tpu_custom_call.1} parent=1 // pred_check_branch
      %30 = sbr.rel (0) target = $region9
    $region8: #{tpu_custom_call.1} parent=1 // pred_region
      %s32 = ssub.s32 1024, 1024
      %33 = vsyncadd [#allocation8], %s32
      %s34 = sshll.u32 [#allocation7], 4
      %s35 = int_to_ptr.vmem [resolvable:$true] %s34
      %40 = dma.hbm_to_vmem [thread:$0]  %s1, 1024, %s35, [#allocation8], 64, 64, 4
    $region9: #{tpu_custom_call.1} parent=1 // pred_fallthru
      _
    // Predicated region
    $region10: #{tpu_custom_call.1} parent=1 // pred_check
      _
    $region11: #{tpu_custom_call.1} parent=1 // pred_check_branch
      %42 = sbr.rel (0) target = $region13
    $region12: #{tpu_custom_call.1} parent=1 // pred_region
      %s44 = ssub.s32 1024, 1024
      %45 = vsyncadd [#allocation8], %s44
      %s46 = sshll.u32 [#allocation9], 4
      %s47 = int_to_ptr.vmem [resolvable:$true] %s46
      %52 = dma.hbm_to_vmem [thread:$0]  %s2, 1024, %s47, [#allocation8], 64, 64, 4
    $region13: #{tpu_custom_call.1} parent=1 // pred_fallthru
      _
    // Predicated region
    $region14: #{tpu_custom_call.1} parent=1 // pred_check
      _
    $region15: #{tpu_custom_call.1} parent=1 // pred_check_branch
      %54 = sbr.rel (0) target = $region17
    $region16: #{tpu_custom_call.1} parent=1 // pred_region
      %s56 = ssub.s32 4096, 4096
      %57 = vsyncadd [#allocation11], %s56
      %s58 = sshll.u32 [#allocation10], 4
      %s59 = int_to_ptr.vmem [resolvable:$true] %s58
      %64 = dma.hbm_to_vmem [thread:$0]  %s3, 4096, %s59, [#allocation11], 256, 256, 16
    $region17: #{tpu_custom_call.1} parent=1 // pred_fallthru
      _
    // Predicated region
    $region18: #{tpu_custom_call.1} parent=1 // pred_check
      _
    $region19: #{tpu_custom_call.1} parent=1 // pred_check_branch
      %66 = sbr.rel (0) target = $region21
    $region20: #{tpu_custom_call.1} parent=1 // pred_region
      %s68 = ssub.s32 4096, 4096
      %69 = vsyncadd [#allocation11], %s68
      %s70 = sshll.u32 [#allocation12], 4
      %s71 = int_to_ptr.vmem [resolvable:$true] %s70
      %76 = dma.hbm_to_vmem [thread:$0]  %s4, 4096, %s71, [#allocation11], 256, 256, 16
    $region21: #{tpu_custom_call.1} parent=1 // pred_fallthru
      _
    // Predicated region
    $region22: #{tpu_custom_call.1} parent=1 // pred_check
      _
    $region23: #{tpu_custom_call.1} parent=1 // pred_check_branch
      %78 = sbr.rel (0) target = $region25
    $region24: #{tpu_custom_call.1} parent=1 // pred_region
      _
    $region25: #{tpu_custom_call.1} parent=1 // pred_fallthru
      _
    // Predicated region
    $region26: #{tpu_custom_call.1} parent=1 // pred_check
      _
    $region27: #{tpu_custom_call.1} parent=1 // pred_check_branch
      %80 = sbr.rel (0) target = $region29
    $region28: #{tpu_custom_call.1} parent=1 // pred_region
      %81 = dma.done [#allocation5], 512
    $region29: #{tpu_custom_call.1} parent=1 // pred_fallthru
      _
    // Predicated region
    $region30: #{tpu_custom_call.1} parent=1 // pred_check
      _
    $region31: #{tpu_custom_call.1} parent=1 // pred_check_branch
      %83 = sbr.rel (0) target = $region33
    $region32: #{tpu_custom_call.1} parent=1 // pred_region
      %84 = dma.done [#allocation8], 1024
    $region33: #{tpu_custom_call.1} parent=1 // pred_fallthru
      _
    // Predicated region
    $region34: #{tpu_custom_call.1} parent=1 // pred_check
      _
    $region35: #{tpu_custom_call.1} parent=1 // pred_check_branch
      %86 = sbr.rel (0) target = $region37
    $region36: #{tpu_custom_call.1} parent=1 // pred_region
      %87 = dma.done [#allocation8], 1024
    $region37: #{tpu_custom_call.1} parent=1 // pred_fallthru
      _
    // Predicated region
    $region38: #{tpu_custom_call.1} parent=1 // pred_check
      _
    $region39: #{tpu_custom_call.1} parent=1 // pred_check_branch
      %89 = sbr.rel (0) target = $region41
    $region40: #{tpu_custom_call.1} parent=1 // pred_region
      %90 = dma.done [#allocation11], 4096
    $region41: #{tpu_custom_call.1} parent=1 // pred_fallthru
      _
    // Predicated region
    $region42: #{tpu_custom_call.1} parent=1 // pred_check
      _
    $region43: #{tpu_custom_call.1} parent=1 // pred_check_branch
      %92 = sbr.rel (0) target = $region45
    $region44: #{tpu_custom_call.1} parent=1 // pred_region
      %93 = dma.done [#allocation11], 4096
    $region45: #{tpu_custom_call.1} parent=1 // pred_fallthru
      _
    %p95 = scmp.eq.s32.totalorder 0, 0
    // Predicated region
    $region46: #{tpu_custom_call.1} parent=1 // pred_check
      %p96 = pneg %p95
    $region47: #{tpu_custom_call.1} parent=1 // pred_check_branch
      %98 = sbr.rel (%p96) target = $region49
    $region48: #{tpu_custom_call.1} parent=1 // pred_region
      %99 = vst [vmem:[#allocation2] sm:$0xff] 0.0
      %100 = vst [vmem:[#allocation2 + $0x8] sm:$0xff] 0.0
      %101 = vst [vmem:[#allocation2 + $0x10] sm:$0xff] 0.0
      %102 = vst [vmem:[#allocation2 + $0x18] sm:$0xff] 0.0
      %103 = vst [vmem:[#allocation2 + $0x20] sm:$0xff] 0.0
      %104 = vst [vmem:[#allocation2 + $0x28] sm:$0xff] 0.0
      %105 = vst [vmem:[#allocation2 + $0x30] sm:$0xff] 0.0
      %106 = vst [vmem:[#allocation2 + $0x38] sm:$0xff] 0.0
      %107 = vst [vmem:[#allocation2 + $0x40] sm:$0xff] 0.0
      %108 = vst [vmem:[#allocation2 + $0x48] sm:$0xff] 0.0
      %109 = vst [vmem:[#allocation2 + $0x50] sm:$0xff] 0.0
      %110 = vst [vmem:[#allocation2 + $0x58] sm:$0xff] 0.0
      %111 = vst [vmem:[#allocation2 + $0x60] sm:$0xff] 0.0
      %112 = vst [vmem:[#allocation2 + $0x68] sm:$0xff] 0.0
      %113 = vst [vmem:[#allocation2 + $0x70] sm:$0xff] 0.0
      %114 = vst [vmem:[#allocation2 + $0x78] sm:$0xff] 0.0
      %vm115 = vcmask 7168
      %116 = vst.msk [vmem:[#allocation3] sm:$0xff] %vm115, 0.0
      %117 = vst.msk [vmem:[#allocation3 + $0x8] sm:$0xff] %vm115, 0.0
      %118 = vst.msk [vmem:[#allocation3 + $0x10] sm:$0xff] %vm115, 0.0
      %119 = vst.msk [vmem:[#allocation3 + $0x18] sm:$0xff] %vm115, 0.0
      %120 = vst.msk [vmem:[#allocation3 + $0x20] sm:$0xff] %vm115, 0.0
      %121 = vst.msk [vmem:[#allocation3 + $0x28] sm:$0xff] %vm115, 0.0
      %122 = vst.msk [vmem:[#allocation3 + $0x30] sm:$0xff] %vm115, 0.0
      %123 = vst.msk [vmem:[#allocation3 + $0x38] sm:$0xff] %vm115, 0.0
      %124 = vst.msk [vmem:[#allocation3 + $0x40] sm:$0xff] %vm115, 0.0
      %125 = vst.msk [vmem:[#allocation3 + $0x48] sm:$0xff] %vm115, 0.0
      %126 = vst.msk [vmem:[#allocation3 + $0x50] sm:$0xff] %vm115, 0.0
      %127 = vst.msk [vmem:[#allocation3 + $0x58] sm:$0xff] %vm115, 0.0
      %128 = vst.msk [vmem:[#allocation3 + $0x60] sm:$0xff] %vm115, 0.0
      %129 = vst.msk [vmem:[#allocation3 + $0x68] sm:$0xff] %vm115, 0.0
      %130 = vst.msk [vmem:[#allocation3 + $0x70] sm:$0xff] %vm115, 0.0
      %131 = vst.msk [vmem:[#allocation3 + $0x78] sm:$0xff] %vm115, 0.0
    $region49: #{tpu_custom_call.1} parent=1 // pred_fallthru
      _
    %v132 = vld [vmem:[#allocation4] sm:$0xff]
    %v133 = vld [vmem:[#allocation4 + $0x8] sm:$0xff]
    %v134 = vld [vmem:[#allocation4 + $0x10] sm:$0xff]
    %v135 = vld [vmem:[#allocation4 + $0x18] sm:$0xff]
    %v136 = vunpack.c.0.s8 %v132
    %v137 = vunpack.c.1.s8 %v132
    %v138 = vunpack.c.2.s8 %v132
    %v139 = vunpack.c.3.s8 %v132
    %v140 = vunpack.c.0.s8 %v133
    %v141 = vunpack.c.1.s8 %v133
    %v142 = vunpack.c.2.s8 %v133
    %v143 = vunpack.c.3.s8 %v133
    %v144 = vunpack.c.0.s8 %v134
    %v145 = vunpack.c.1.s8 %v134
    %v146 = vunpack.c.2.s8 %v134
    %v147 = vunpack.c.3.s8 %v134
    %v148 = vunpack.c.0.s8 %v135
    %v149 = vunpack.c.1.s8 %v135
    %v150 = vunpack.c.2.s8 %v135
    %v151 = vunpack.c.3.s8 %v135
    %v152 = vcvt.s32.f32 %v136
    %v153 = vcvt.s32.f32 %v137
    %v154 = vcvt.s32.f32 %v138
    %v155 = vcvt.s32.f32 %v139
    %v156 = vcvt.s32.f32 %v140
    %v157 = vcvt.s32.f32 %v141
    %v158 = vcvt.s32.f32 %v142
    %v159 = vcvt.s32.f32 %v143
    %v160 = vcvt.s32.f32 %v144
    %v161 = vcvt.s32.f32 %v145
    %v162 = vcvt.s32.f32 %v146
    %v163 = vcvt.s32.f32 %v147
    %v164 = vcvt.s32.f32 %v148
    %v165 = vcvt.s32.f32 %v149
    %v166 = vcvt.s32.f32 %v150
    %v167 = vcvt.s32.f32 %v151
    %v168 = vunpack.c.l.s8.bf16 %v132
    %v169 = vunpack.c.h.s8.bf16 %v132
    %v170 = vunpack.c.l.s8.bf16 %v133
    %v171 = vunpack.c.h.s8.bf16 %v133
    %v172 = vunpack.c.l.s8.bf16 %v134
    %v173 = vunpack.c.h.s8.bf16 %v134
    %v174 = vunpack.c.l.s8.bf16 %v135
    %v175 = vunpack.c.h.s8.bf16 %v135
    %v176 = vld [vmem:[#allocation2] sm:$0xff]
    %v177 = vld [vmem:[#allocation2 + $0x8] sm:$0xff]
    %v178 = vld [vmem:[#allocation2 + $0x10] sm:$0xff]
    %v179 = vld [vmem:[#allocation2 + $0x18] sm:$0xff]
    %v180 = vld [vmem:[#allocation2 + $0x20] sm:$0xff]
    %v181 = vld [vmem:[#allocation2 + $0x28] sm:$0xff]
    %v182 = vld [vmem:[#allocation2 + $0x30] sm:$0xff]
    %v183 = vld [vmem:[#allocation2 + $0x38] sm:$0xff]
    %v184 = vld [vmem:[#allocation2 + $0x40] sm:$0xff]
    %v185 = vld [vmem:[#allocation2 + $0x48] sm:$0xff]
    %v186 = vld [vmem:[#allocation2 + $0x50] sm:$0xff]
    %v187 = vld [vmem:[#allocation2 + $0x58] sm:$0xff]
    %v188 = vld [vmem:[#allocation2 + $0x60] sm:$0xff]
    %v189 = vld [vmem:[#allocation2 + $0x68] sm:$0xff]
    %v190 = vld [vmem:[#allocation2 + $0x70] sm:$0xff]
    %v191 = vld [vmem:[#allocation2 + $0x78] sm:$0xff]
    %v192 = vld [vmem:[#allocation7] sm:$0xf]
    %v193 = vld [vmem:[#allocation7 + $0x4] sm:$0xf]
    %v194 = vld [vmem:[#allocation7 + $0x8] sm:$0xf]
    %v195 = vld [vmem:[#allocation7 + $0xc] sm:$0xf]
    %v196 = vld [vmem:[#allocation7 + $0x10] sm:$0xf]
    %v197 = vld [vmem:[#allocation7 + $0x14] sm:$0xf]
    %v198 = vld [vmem:[#allocation7 + $0x18] sm:$0xf]
    %v199 = vld [vmem:[#allocation7 + $0x1c] sm:$0xf]
    %v200 = vld [vmem:[#allocation7 + $0x20] sm:$0xf]
    %v201 = vld [vmem:[#allocation7 + $0x24] sm:$0xf]
    %v202 = vld [vmem:[#allocation7 + $0x28] sm:$0xf]
    %v203 = vld [vmem:[#allocation7 + $0x2c] sm:$0xf]
    %v204 = vld [vmem:[#allocation7 + $0x30] sm:$0xf]
    %v205 = vld [vmem:[#allocation7 + $0x34] sm:$0xf]
    %v206 = vld [vmem:[#allocation7 + $0x38] sm:$0xf]
    %v207 = vld [vmem:[#allocation7 + $0x3c] sm:$0xf]
    %v224 = vunpack.c.l.b16 %v192
    %v225 = vunpack.c.l.b16 %v193
    %v226 = vunpack.c.l.b16 %v194
    %v227 = vunpack.c.l.b16 %v195
    %v228 = vunpack.c.l.b16 %v196
    %v229 = vunpack.c.l.b16 %v197
    %v230 = vunpack.c.l.b16 %v198
    %v231 = vunpack.c.l.b16 %v199
    %v232 = vunpack.c.l.b16 %v200
    %v233 = vunpack.c.l.b16 %v201
    %v234 = vunpack.c.l.b16 %v202
    %v235 = vunpack.c.l.b16 %v203
    %v236 = vunpack.c.l.b16 %v204
    %v237 = vunpack.c.l.b16 %v205
    %v238 = vunpack.c.l.b16 %v206
    %v239 = vunpack.c.l.b16 %v207
    %v240 = vpack.c.b16 %v225, %v224
    %v241 = vpack.c.b16 %v227, %v226
    %v242 = vpack.c.b16 %v229, %v228
    %v243 = vpack.c.b16 %v231, %v230
    %v244 = vpack.c.b16 %v233, %v232
    %v245 = vpack.c.b16 %v235, %v234
    %v246 = vpack.c.b16 %v237, %v236
    %v247 = vpack.c.b16 %v239, %v238
    %256 = vmatprep.subr.bf16.mxu0 0
    %257 = vmatpush1.bf16.msra.mxu0 %v240
    %258 = vmatprep.subr.bf16.mxu0 0
    %259 = vmatpush1.bf16.msra.mxu0 %v241
    %260 = vmatprep.subr.bf16.mxu0 0
    %261 = vmatpush1.bf16.msra.mxu0 %v242
    %262 = vmatprep.subr.bf16.mxu0 0
    %263 = vmatpush1.bf16.msra.mxu0 %v243
    %264 = vmatprep.subr.bf16.mxu0 0
    %265 = vmatpush1.bf16.msra.mxu0 %v244
    %266 = vmatprep.subr.bf16.mxu0 0
    %267 = vmatpush1.bf16.msra.mxu0 %v245
    %268 = vmatprep.subr.bf16.mxu0 0
    %269 = vmatpush1.bf16.msra.mxu0 %v246
    %270 = vmatprep.subr.bf16.mxu0 0
    %271 = vmatpush1.bf16.msra.mxu0 %v247
    %272 = vmatprep.subr.bf16.mxu0 0
    %273 = vmatpush1.bf16.msra.mxu0 0
    %274 = vmatprep.subr.bf16.mxu0 0
    %275 = vmatpush1.bf16.msra.mxu0 0
    %276 = vmatprep.subr.bf16.mxu0 0
    %277 = vmatpush1.bf16.msra.mxu0 0
    %278 = vmatprep.subr.bf16.mxu0 0
    %279 = vmatpush1.bf16.msra.mxu0 0
    %280 = vmatprep.subr.bf16.mxu0 0
    %281 = vmatpush1.bf16.msra.mxu0 0
    %282 = vmatprep.subr.bf16.mxu0 0
    %283 = vmatpush1.bf16.msra.mxu0 0
    %284 = vmatprep.subr.bf16.mxu0 0
    %285 = vmatpush1.bf16.msra.mxu0 0
    %286 = vmatprep.subr.bf16.mxu0 0
    %287 = vmatpush1.bf16.msra.mxu0 0
    %288 = vmatprep.mubr.bf16.mxu0 0
    %289 = vmatmul.mubr.bf16.gmra.mrb[0].mxu0 %v168
    %v290 = vpop.f32.mrb[0].mxu0
    %v291 = vadd.f32 0.0, %v290
    %v292 = vpop.f32.mrb[0].mxu0
    %v293 = vpop.f32.mrb[0].mxu0
    %v294 = vadd.f32 0.0, %v293
    %v295 = vpop.f32.mrb[0].mxu0
    %296 = vmatprep.mubr.bf16.mxu0 0
    %297 = vmatmul.mubr.bf16.gmra.mrb[0].mxu0 %v169
    %v298 = vpop.f32.mrb[0].mxu0
    %v299 = vadd.f32 0.0, %v298
    %v300 = vpop.f32.mrb[0].mxu0
    %v301 = vpop.f32.mrb[0].mxu0
    %v302 = vadd.f32 0.0, %v301
    %v303 = vpop.f32.mrb[0].mxu0
    %304 = vmatprep.mubr.bf16.mxu0 0
    %305 = vmatmul.mubr.bf16.gmra.mrb[0].mxu0 %v170
    %v306 = vpop.f32.mrb[0].mxu0
    %v307 = vadd.f32 0.0, %v306
    %v308 = vpop.f32.mrb[0].mxu0
    %v309 = vpop.f32.mrb[0].mxu0
    %v310 = vadd.f32 0.0, %v309
    %v311 = vpop.f32.mrb[0].mxu0
    %312 = vmatprep.mubr.bf16.mxu0 0
    %313 = vmatmul.mubr.bf16.gmra.mrb[0].mxu0 %v171
    %v314 = vpop.f32.mrb[0].mxu0
    %v315 = vadd.f32 0.0, %v314
    %v316 = vpop.f32.mrb[0].mxu0
    %v317 = vpop.f32.mrb[0].mxu0
    %v318 = vadd.f32 0.0, %v317
    %v319 = vpop.f32.mrb[0].mxu0
    %320 = vmatprep.mubr.bf16.mxu0 0
    %321 = vmatmul.mubr.bf16.gmra.mrb[0].mxu0 %v172
    %v322 = vpop.f32.mrb[0].mxu0
    %v323 = vadd.f32 0.0, %v322
    %v324 = vpop.f32.mrb[0].mxu0
    %v325 = vpop.f32.mrb[0].mxu0
    %v326 = vadd.f32 0.0, %v325
    %v327 = vpop.f32.mrb[0].mxu0
    %328 = vmatprep.mubr.bf16.mxu0 0
    %329 = vmatmul.mubr.bf16.gmra.mrb[0].mxu0 %v173
    %v330 = vpop.f32.mrb[0].mxu0
    %v331 = vadd.f32 0.0, %v330
    %v332 = vpop.f32.mrb[0].mxu0
    %v333 = vpop.f32.mrb[0].mxu0
    %v334 = vadd.f32 0.0, %v333
    %v335 = vpop.f32.mrb[0].mxu0
    %336 = vmatprep.mubr.bf16.mxu0 0
    %337 = vmatmul.mubr.bf16.gmra.mrb[0].mxu0 %v174
    %v338 = vpop.f32.mrb[0].mxu0
    %v339 = vadd.f32 0.0, %v338
    %v340 = vpop.f32.mrb[0].mxu0
    %v341 = vpop.f32.mrb[0].mxu0
    %v342 = vadd.f32 0.0, %v341
    %v343 = vpop.f32.mrb[0].mxu0
    %344 = vmatprep.mubr.bf16.mxu0 0
    %345 = vmatmul.mubr.bf16.gmra.mrb[0].mxu0 %v175
    %v346 = vpop.f32.mrb[0].mxu0
    %v347 = vadd.f32 0.0, %v346
    %v348 = vpop.f32.mrb[0].mxu0
    %v349 = vpop.f32.mrb[0].mxu0
    %v350 = vadd.f32 0.0, %v349
    %v351 = vpop.f32.mrb[0].mxu0
    %352 = vdwg.mxu0
    %v353 = vadd.f32 %v176, %v291
    %v354 = vadd.f32 %v177, %v294
    %v355 = vadd.f32 %v178, %v299
    %v356 = vadd.f32 %v179, %v302
    %v357 = vadd.f32 %v180, %v307
    %v358 = vadd.f32 %v181, %v310
    %v359 = vadd.f32 %v182, %v315
    %v360 = vadd.f32 %v183, %v318
    %v361 = vadd.f32 %v184, %v323
    %v362 = vadd.f32 %v185, %v326
    %v363 = vadd.f32 %v186, %v331
    %v364 = vadd.f32 %v187, %v334
    %v365 = vadd.f32 %v188, %v339
    %v366 = vadd.f32 %v189, %v342
    %v367 = vadd.f32 %v190, %v347
    %v368 = vadd.f32 %v191, %v350
    %369 = vst [vmem:[#allocation2] sm:$0xff] %v353
    %370 = vst [vmem:[#allocation2 + $0x8] sm:$0xff] %v354
    %371 = vst [vmem:[#allocation2 + $0x10] sm:$0xff] %v355
    %372 = vst [vmem:[#allocation2 + $0x18] sm:$0xff] %v356
    %373 = vst [vmem:[#allocation2 + $0x20] sm:$0xff] %v357
    %374 = vst [vmem:[#allocation2 + $0x28] sm:$0xff] %v358
    %375 = vst [vmem:[#allocation2 + $0x30] sm:$0xff] %v359
    %376 = vst [vmem:[#allocation2 + $0x38] sm:$0xff] %v360
    %377 = vst [vmem:[#allocation2 + $0x40] sm:$0xff] %v361
    %378 = vst [vmem:[#allocation2 + $0x48] sm:$0xff] %v362
    %379 = vst [vmem:[#allocation2 + $0x50] sm:$0xff] %v363
    %380 = vst [vmem:[#allocation2 + $0x58] sm:$0xff] %v364
    %381 = vst [vmem:[#allocation2 + $0x60] sm:$0xff] %v365
    %382 = vst [vmem:[#allocation2 + $0x68] sm:$0xff] %v366
    %383 = vst [vmem:[#allocation2 + $0x70] sm:$0xff] %v367
    %384 = vst [vmem:[#allocation2 + $0x78] sm:$0xff] %v368
    %v385 = vld [vmem:[#allocation3] sm:$0xff]
    %v386 = vld [vmem:[#allocation3 + $0x8] sm:$0xff]
    %v387 = vld [vmem:[#allocation3 + $0x10] sm:$0xff]
    %v388 = vld [vmem:[#allocation3 + $0x18] sm:$0xff]
    %v389 = vld [vmem:[#allocation3 + $0x20] sm:$0xff]
    %v390 = vld [vmem:[#allocation3 + $0x28] sm:$0xff]
    %v391 = vld [vmem:[#allocation3 + $0x30] sm:$0xff]
    %v392 = vld [vmem:[#allocation3 + $0x38] sm:$0xff]
    %v393 = vld [vmem:[#allocation3 + $0x40] sm:$0xff]
    %v394 = vld [vmem:[#allocation3 + $0x48] sm:$0xff]
    %v395 = vld [vmem:[#allocation3 + $0x50] sm:$0xff]
    %v396 = vld [vmem:[#allocation3 + $0x58] sm:$0xff]
    %v397 = vld [vmem:[#allocation3 + $0x60] sm:$0xff]
    %v398 = vld [vmem:[#allocation3 + $0x68] sm:$0xff]
    %v399 = vld [vmem:[#allocation3 + $0x70] sm:$0xff]
    %v400 = vld [vmem:[#allocation3 + $0x78] sm:$0xff]
    %401 = vadd.xlane.f32.xlu0 %v152
    %v402 = vpop.xlane.xlu0 %401
    %403 = vadd.xlane.f32.xlu0 %v153
    %v404 = vpop.xlane.xlu0 %403
    %405 = vadd.xlane.f32.xlu0 %v154
    %v406 = vpop.xlane.xlu0 %405
    %407 = vadd.xlane.f32.xlu0 %v155
    %v408 = vpop.xlane.xlu0 %407
    %409 = vadd.xlane.f32.xlu0 %v156
    %v410 = vpop.xlane.xlu0 %409
    %411 = vadd.xlane.f32.xlu0 %v157
    %v412 = vpop.xlane.xlu0 %411
    %413 = vadd.xlane.f32.xlu0 %v158
    %v414 = vpop.xlane.xlu0 %413
    %415 = vadd.xlane.f32.xlu0 %v159
    %v416 = vpop.xlane.xlu0 %415
    %417 = vadd.xlane.f32.xlu0 %v160
    %v418 = vpop.xlane.xlu0 %417
    %419 = vadd.xlane.f32.xlu0 %v161
    %v420 = vpop.xlane.xlu0 %419
    %421 = vadd.xlane.f32.xlu0 %v162
    %v422 = vpop.xlane.xlu0 %421
    %423 = vadd.xlane.f32.xlu0 %v163
    %v424 = vpop.xlane.xlu0 %423
    %425 = vadd.xlane.f32.xlu0 %v164
    %v426 = vpop.xlane.xlu0 %425
    %427 = vadd.xlane.f32.xlu0 %v165
    %v428 = vpop.xlane.xlu0 %427
    %429 = vadd.xlane.f32.xlu0 %v166
    %v430 = vpop.xlane.xlu0 %429
    %431 = vadd.xlane.f32.xlu0 %v167
    %v432 = vpop.xlane.xlu0 %431
    %v433 = vadd.f32 %v385, %v402
    %v434 = vadd.f32 %v386, %v404
    %v435 = vadd.f32 %v387, %v406
    %v436 = vadd.f32 %v388, %v408
    %v437 = vadd.f32 %v389, %v410
    %v438 = vadd.f32 %v390, %v412
    %v439 = vadd.f32 %v391, %v414
    %v440 = vadd.f32 %v392, %v416
    %v441 = vadd.f32 %v393, %v418
    %v442 = vadd.f32 %v394, %v420
    %v443 = vadd.f32 %v395, %v422
    %v444 = vadd.f32 %v396, %v424
    %v445 = vadd.f32 %v397, %v426
    %v446 = vadd.f32 %v398, %v428
    %v447 = vadd.f32 %v399, %v430
    %v448 = vadd.f32 %v400, %v432
    %vm449 = vcmask 7168
    %450 = vst.msk [vmem:[#allocation3] sm:$0xff] %vm449, %v433
    %451 = vst.msk [vmem:[#allocation3 + $0x8] sm:$0xff] %vm449, %v434
    %452 = vst.msk [vmem:[#allocation3 + $0x10] sm:$0xff] %vm449, %v435
    %453 = vst.msk [vmem:[#allocation3 + $0x18] sm:$0xff] %vm449, %v436
    %454 = vst.msk [vmem:[#allocation3 + $0x20] sm:$0xff] %vm449, %v437
    %455 = vst.msk [vmem:[#allocation3 + $0x28] sm:$0xff] %vm449, %v438
    %456 = vst.msk [vmem:[#allocation3 + $0x30] sm:$0xff] %vm449, %v439
    %457 = vst.msk [vmem:[#allocation3 + $0x38] sm:$0xff] %vm449, %v440
    %458 = vst.msk [vmem:[#allocation3 + $0x40] sm:$0xff] %vm449, %v441
    %459 = vst.msk [vmem:[#allocation3 + $0x48] sm:$0xff] %vm449, %v442
    %460 = vst.msk [vmem:[#allocation3 + $0x50] sm:$0xff] %vm449, %v443
    %461 = vst.msk [vmem:[#allocation3 + $0x58] sm:$0xff] %vm449, %v444
    %462 = vst.msk [vmem:[#allocation3 + $0x60] sm:$0xff] %vm449, %v445
    %463 = vst.msk [vmem:[#allocation3 + $0x68] sm:$0xff] %vm449, %v446
    %464 = vst.msk [vmem:[#allocation3 + $0x70] sm:$0xff] %vm449, %v447
    %465 = vst.msk [vmem:[#allocation3 + $0x78] sm:$0xff] %vm449, %v448
    // Predicated region
    $region50: #{tpu_custom_call.1} parent=1 // pred_check
      %p466 = pneg %p95
    $region51: #{tpu_custom_call.1} parent=1 // pred_check_branch
      %468 = sbr.rel (%p466) target = $region53
    $region52: #{tpu_custom_call.1} parent=1 // pred_region
      %v469 = vld [vmem:[#allocation3] sm:$0xff]
      %v470 = vld [vmem:[#allocation3 + $0x8] sm:$0xff]
      %v471 = vld [vmem:[#allocation3 + $0x10] sm:$0xff]
      %v472 = vld [vmem:[#allocation3 + $0x18] sm:$0xff]
      %v473 = vld [vmem:[#allocation3 + $0x20] sm:$0xff]
      %v474 = vld [vmem:[#allocation3 + $0x28] sm:$0xff]
      %v475 = vld [vmem:[#allocation3 + $0x30] sm:$0xff]
      %v476 = vld [vmem:[#allocation3 + $0x38] sm:$0xff]
      %v477 = vld [vmem:[#allocation3 + $0x40] sm:$0xff]
      %v478 = vld [vmem:[#allocation3 + $0x48] sm:$0xff]
      %v479 = vld [vmem:[#allocation3 + $0x50] sm:$0xff]
      %v480 = vld [vmem:[#allocation3 + $0x58] sm:$0xff]
      %v481 = vld [vmem:[#allocation3 + $0x60] sm:$0xff]
      %v482 = vld [vmem:[#allocation3 + $0x68] sm:$0xff]
      %v483 = vld [vmem:[#allocation3 + $0x70] sm:$0xff]
      %v484 = vld [vmem:[#allocation3 + $0x78] sm:$0xff]
      %v485 = vmax.f32 %v469, 1.0
      %v486 = vmax.f32 %v470, 1.0
      %v487 = vmax.f32 %v471, 1.0
      %v488 = vmax.f32 %v472, 1.0
      %v489 = vmax.f32 %v473, 1.0
      %v490 = vmax.f32 %v474, 1.0
      %v491 = vmax.f32 %v475, 1.0
      %v492 = vmax.f32 %v476, 1.0
      %v493 = vmax.f32 %v477, 1.0
      %v494 = vmax.f32 %v478, 1.0
      %v495 = vmax.f32 %v479, 1.0
      %v496 = vmax.f32 %v480, 1.0
      %v497 = vmax.f32 %v481, 1.0
      %v498 = vmax.f32 %v482, 1.0
      %v499 = vmax.f32 %v483, 1.0
      %v500 = vmax.f32 %v484, 1.0
      %v501 = vrcp.pop %v485
      %v502 = vmul.f32 1.0, %v501
      %v503 = vrcp.pop %v486
      %v504 = vmul.f32 1.0, %v503
      %v505 = vrcp.pop %v487
      %v506 = vmul.f32 1.0, %v505
      %v507 = vrcp.pop %v488
      %v508 = vmul.f32 1.0, %v507
      %v509 = vrcp.pop %v489
      %v510 = vmul.f32 1.0, %v509
      %v511 = vrcp.pop %v490
      %v512 = vmul.f32 1.0, %v511
      %v513 = vrcp.pop %v491
      %v514 = vmul.f32 1.0, %v513
      %v515 = vrcp.pop %v492
      %v516 = vmul.f32 1.0, %v515
      %v517 = vrcp.pop %v493
      %v518 = vmul.f32 1.0, %v517
      %v519 = vrcp.pop %v494
      %v520 = vmul.f32 1.0, %v519
      %v521 = vrcp.pop %v495
      %v522 = vmul.f32 1.0, %v521
      %v523 = vrcp.pop %v496
      %v524 = vmul.f32 1.0, %v523
      %v525 = vrcp.pop %v497
      %v526 = vmul.f32 1.0, %v525
      %v527 = vrcp.pop %v498
      %v528 = vmul.f32 1.0, %v527
      %v529 = vrcp.pop %v499
      %v530 = vmul.f32 1.0, %v529
      %v531 = vrcp.pop %v500
      %v532 = vmul.f32 1.0, %v531
      %v533 = vld [vmem:[#allocation2] sm:$0xff]
      %v534 = vld [vmem:[#allocation2 + $0x8] sm:$0xff]
      %v535 = vld [vmem:[#allocation2 + $0x10] sm:$0xff]
      %v536 = vld [vmem:[#allocation2 + $0x18] sm:$0xff]
      %v537 = vld [vmem:[#allocation2 + $0x20] sm:$0xff]
      %v538 = vld [vmem:[#allocation2 + $0x28] sm:$0xff]
      %v539 = vld [vmem:[#allocation2 + $0x30] sm:$0xff]
      %v540 = vld [vmem:[#allocation2 + $0x38] sm:$0xff]
      %v541 = vld [vmem:[#allocation2 + $0x40] sm:$0xff]
      %v542 = vld [vmem:[#allocation2 + $0x48] sm:$0xff]
      %v543 = vld [vmem:[#allocation2 + $0x50] sm:$0xff]
      %v544 = vld [vmem:[#allocation2 + $0x58] sm:$0xff]
      %v545 = vld [vmem:[#allocation2 + $0x60] sm:$0xff]
      %v546 = vld [vmem:[#allocation2 + $0x68] sm:$0xff]
      %v547 = vld [vmem:[#allocation2 + $0x70] sm:$0xff]
      %v548 = vld [vmem:[#allocation2 + $0x78] sm:$0xff]
      %550 = vset.pattern.permute.xlu0 0
      %551 = vperm.xlu0 %550, %v502
      %v552 = vpop.permute.xlu0 %551
      %555 = vset.pattern.permute.xlu0 0
      %556 = vperm.xlu0 %555, %v504
      %v557 = vpop.permute.xlu0 %556
      %560 = vset.pattern.permute.xlu0 0
      %561 = vperm.xlu0 %560, %v506
      %v562 = vpop.permute.xlu0 %561
      %565 = vset.pattern.permute.xlu0 0
      %566 = vperm.xlu0 %565, %v508
      %v567 = vpop.permute.xlu0 %566
      %570 = vset.pattern.permute.xlu0 0
      %571 = vperm.xlu0 %570, %v510
      %v572 = vpop.permute.xlu0 %571
      %575 = vset.pattern.permute.xlu0 0
      %576 = vperm.xlu0 %575, %v512
      %v577 = vpop.permute.xlu0 %576
      %580 = vset.pattern.permute.xlu0 0
      %581 = vperm.xlu0 %580, %v514
      %v582 = vpop.permute.xlu0 %581
      %585 = vset.pattern.permute.xlu0 0
      %586 = vperm.xlu0 %585, %v516
      %v587 = vpop.permute.xlu0 %586
      %590 = vset.pattern.permute.xlu0 0
      %591 = vperm.xlu0 %590, %v518
      %v592 = vpop.permute.xlu0 %591
      %595 = vset.pattern.permute.xlu0 0
      %596 = vperm.xlu0 %595, %v520
      %v597 = vpop.permute.xlu0 %596
      %600 = vset.pattern.permute.xlu0 0
      %601 = vperm.xlu0 %600, %v522
      %v602 = vpop.permute.xlu0 %601
      %605 = vset.pattern.permute.xlu0 0
      %606 = vperm.xlu0 %605, %v524
      %v607 = vpop.permute.xlu0 %606
      %610 = vset.pattern.permute.xlu0 0
      %611 = vperm.xlu0 %610, %v526
      %v612 = vpop.permute.xlu0 %611
      %615 = vset.pattern.permute.xlu0 0
      %616 = vperm.xlu0 %615, %v528
      %v617 = vpop.permute.xlu0 %616
      %620 = vset.pattern.permute.xlu0 0
      %621 = vperm.xlu0 %620, %v530
      %v622 = vpop.permute.xlu0 %621
      %625 = vset.pattern.permute.xlu0 0
      %626 = vperm.xlu0 %625, %v532
      %v627 = vpop.permute.xlu0 %626
      %v629 = vmul.f32 %v533, %v552
      %v630 = vmul.f32 %v534, %v557
      %v631 = vmul.f32 %v535, %v562
      %v632 = vmul.f32 %v536, %v567
      %v633 = vmul.f32 %v537, %v572
      %v634 = vmul.f32 %v538, %v577
      %v635 = vmul.f32 %v539, %v582
      %v636 = vmul.f32 %v540, %v587
      %v637 = vmul.f32 %v541, %v592
      %v638 = vmul.f32 %v542, %v597
      %v639 = vmul.f32 %v543, %v602
      %v640 = vmul.f32 %v544, %v607
      %v641 = vmul.f32 %v545, %v612
      %v642 = vmul.f32 %v546, %v617
      %v643 = vmul.f32 %v547, %v622
      %v644 = vmul.f32 %v548, %v627
      %v645 = vpack.c.bf16 %v630, %v629
      %v646 = vpack.c.bf16 %v632, %v631
      %v647 = vpack.c.bf16 %v634, %v633
      %v648 = vpack.c.bf16 %v636, %v635
      %v649 = vpack.c.bf16 %v638, %v637
      %v650 = vpack.c.bf16 %v640, %v639
      %v651 = vpack.c.bf16 %v642, %v641
      %v652 = vpack.c.bf16 %v644, %v643
      %v653 = vld [vmem:[#allocation9] sm:$0xf]
      %v654 = vld [vmem:[#allocation9 + $0x4] sm:$0xf]
      %v655 = vld [vmem:[#allocation9 + $0x8] sm:$0xf]
      %v656 = vld [vmem:[#allocation9 + $0xc] sm:$0xf]
      %v657 = vld [vmem:[#allocation9 + $0x10] sm:$0xf]
      %v658 = vld [vmem:[#allocation9 + $0x14] sm:$0xf]
      %v659 = vld [vmem:[#allocation9 + $0x18] sm:$0xf]
      %v660 = vld [vmem:[#allocation9 + $0x1c] sm:$0xf]
      %v661 = vld [vmem:[#allocation9 + $0x20] sm:$0xf]
      %v662 = vld [vmem:[#allocation9 + $0x24] sm:$0xf]
      %v663 = vld [vmem:[#allocation9 + $0x28] sm:$0xf]
      %v664 = vld [vmem:[#allocation9 + $0x2c] sm:$0xf]
      %v665 = vld [vmem:[#allocation9 + $0x30] sm:$0xf]
      %v666 = vld [vmem:[#allocation9 + $0x34] sm:$0xf]
      %v667 = vld [vmem:[#allocation9 + $0x38] sm:$0xf]
      %v668 = vld [vmem:[#allocation9 + $0x3c] sm:$0xf]
      %v669 = vld [vmem:[#allocation10] sm:$0xff]
      %v670 = vld [vmem:[#allocation10 + $0x8] sm:$0xff]
      %v671 = vld [vmem:[#allocation10 + $0x10] sm:$0xff]
      %v672 = vld [vmem:[#allocation10 + $0x18] sm:$0xff]
      %v673 = vld [vmem:[#allocation10 + $0x20] sm:$0xff]
      %v674 = vld [vmem:[#allocation10 + $0x28] sm:$0xff]
      %v675 = vld [vmem:[#allocation10 + $0x30] sm:$0xff]
      %v676 = vld [vmem:[#allocation10 + $0x38] sm:$0xff]
      %v677 = vld [vmem:[#allocation10 + $0x40] sm:$0xff]
      %v678 = vld [vmem:[#allocation10 + $0x48] sm:$0xff]
      %v679 = vld [vmem:[#allocation10 + $0x50] sm:$0xff]
      %v680 = vld [vmem:[#allocation10 + $0x58] sm:$0xff]
      %v681 = vld [vmem:[#allocation10 + $0x60] sm:$0xff]
      %v682 = vld [vmem:[#allocation10 + $0x68] sm:$0xff]
      %v683 = vld [vmem:[#allocation10 + $0x70] sm:$0xff]
      %v684 = vld [vmem:[#allocation10 + $0x78] sm:$0xff]
      %v685 = vld [vmem:[#allocation10 + $0x80] sm:$0xff]
      %v686 = vld [vmem:[#allocation10 + $0x88] sm:$0xff]
      %v687 = vld [vmem:[#allocation10 + $0x90] sm:$0xff]
      %v688 = vld [vmem:[#allocation10 + $0x98] sm:$0xff]
      %v689 = vld [vmem:[#allocation10 + $0xa0] sm:$0xff]
      %v690 = vld [vmem:[#allocation10 + $0xa8] sm:$0xff]
      %v691 = vld [vmem:[#allocation10 + $0xb0] sm:$0xff]
      %v692 = vld [vmem:[#allocation10 + $0xb8] sm:$0xff]
      %v693 = vld [vmem:[#allocation10 + $0xc0] sm:$0xff]
      %v694 = vld [vmem:[#allocation10 + $0xc8] sm:$0xff]
      %v695 = vld [vmem:[#allocation10 + $0xd0] sm:$0xff]
      %v696 = vld [vmem:[#allocation10 + $0xd8] sm:$0xff]
      %v697 = vld [vmem:[#allocation10 + $0xe0] sm:$0xff]
      %v698 = vld [vmem:[#allocation10 + $0xe8] sm:$0xff]
      %v699 = vld [vmem:[#allocation10 + $0xf0] sm:$0xff]
      %v700 = vld [vmem:[#allocation10 + $0xf8] sm:$0xff]
      %v701 = vld [vmem:[#allocation12] sm:$0xff]
      %v702 = vld [vmem:[#allocation12 + $0x8] sm:$0xff]
      %v703 = vld [vmem:[#allocation12 + $0x10] sm:$0xff]
      %v704 = vld [vmem:[#allocation12 + $0x18] sm:$0xff]
      %v705 = vld [vmem:[#allocation12 + $0x20] sm:$0xff]
      %v706 = vld [vmem:[#allocation12 + $0x28] sm:$0xff]
      %v707 = vld [vmem:[#allocation12 + $0x30] sm:$0xff]
      %v708 = vld [vmem:[#allocation12 + $0x38] sm:$0xff]
      %v709 = vld [vmem:[#allocation12 + $0x40] sm:$0xff]
      %v710 = vld [vmem:[#allocation12 + $0x48] sm:$0xff]
      %v711 = vld [vmem:[#allocation12 + $0x50] sm:$0xff]
      %v712 = vld [vmem:[#allocation12 + $0x58] sm:$0xff]
      %v713 = vld [vmem:[#allocation12 + $0x60] sm:$0xff]
      %v714 = vld [vmem:[#allocation12 + $0x68] sm:$0xff]
      %v715 = vld [vmem:[#allocation12 + $0x70] sm:$0xff]
      %v716 = vld [vmem:[#allocation12 + $0x78] sm:$0xff]
      %v717 = vld [vmem:[#allocation12 + $0x80] sm:$0xff]
      %v718 = vld [vmem:[#allocation12 + $0x88] sm:$0xff]
      %v719 = vld [vmem:[#allocation12 + $0x90] sm:$0xff]
      %v720 = vld [vmem:[#allocation12 + $0x98] sm:$0xff]
      %v721 = vld [vmem:[#allocation12 + $0xa0] sm:$0xff]
      %v722 = vld [vmem:[#allocation12 + $0xa8] sm:$0xff]
      %v723 = vld [vmem:[#allocation12 + $0xb0] sm:$0xff]
      %v724 = vld [vmem:[#allocation12 + $0xb8] sm:$0xff]
      %v725 = vld [vmem:[#allocation12 + $0xc0] sm:$0xff]
      %v726 = vld [vmem:[#allocation12 + $0xc8] sm:$0xff]
      %v727 = vld [vmem:[#allocation12 + $0xd0] sm:$0xff]
      %v728 = vld [vmem:[#allocation12 + $0xd8] sm:$0xff]
      %v729 = vld [vmem:[#allocation12 + $0xe0] sm:$0xff]
      %v730 = vld [vmem:[#allocation12 + $0xe8] sm:$0xff]
      %v731 = vld [vmem:[#allocation12 + $0xf0] sm:$0xff]
      %v732 = vld [vmem:[#allocation12 + $0xf8] sm:$0xff]
      %v765 = vunpack.c.l.b16 %v701
      %v766 = vunpack.c.h.b16 %v701
      %v767 = vunpack.c.l.b16 %v702
      %v768 = vunpack.c.h.b16 %v702
      %v769 = vunpack.c.l.b16 %v703
      %v770 = vunpack.c.h.b16 %v703
      %v771 = vunpack.c.l.b16 %v704
      %v772 = vunpack.c.h.b16 %v704
      %v773 = vunpack.c.l.b16 %v705
      %v774 = vunpack.c.h.b16 %v705
      %v775 = vunpack.c.l.b16 %v706
      %v776 = vunpack.c.h.b16 %v706
      %v777 = vunpack.c.l.b16 %v707
      %v778 = vunpack.c.h.b16 %v707
      %v779 = vunpack.c.l.b16 %v708
      %v780 = vunpack.c.h.b16 %v708
      %v781 = vunpack.c.l.b16 %v709
      %v782 = vunpack.c.h.b16 %v709
      %v783 = vunpack.c.l.b16 %v710
      %v784 = vunpack.c.h.b16 %v710
      %v785 = vunpack.c.l.b16 %v711
      %v786 = vunpack.c.h.b16 %v711
      %v787 = vunpack.c.l.b16 %v712
      %v788 = vunpack.c.h.b16 %v712
      %v789 = vunpack.c.l.b16 %v713
      %v790 = vunpack.c.h.b16 %v713
      %v791 = vunpack.c.l.b16 %v714
      %v792 = vunpack.c.h.b16 %v714
      %v793 = vunpack.c.l.b16 %v715
      %v794 = vunpack.c.h.b16 %v715
      %v795 = vunpack.c.l.b16 %v716
      %v796 = vunpack.c.h.b16 %v716
      %v797 = vunpack.c.l.b16 %v717
      %v798 = vunpack.c.h.b16 %v717
      %v799 = vunpack.c.l.b16 %v718
      %v800 = vunpack.c.h.b16 %v718
      %v801 = vunpack.c.l.b16 %v719
      %v802 = vunpack.c.h.b16 %v719
      %v803 = vunpack.c.l.b16 %v720
      %v804 = vunpack.c.h.b16 %v720
      %v805 = vunpack.c.l.b16 %v721
      %v806 = vunpack.c.h.b16 %v721
      %v807 = vunpack.c.l.b16 %v722
      %v808 = vunpack.c.h.b16 %v722
      %v809 = vunpack.c.l.b16 %v723
      %v810 = vunpack.c.h.b16 %v723
      %v811 = vunpack.c.l.b16 %v724
      %v812 = vunpack.c.h.b16 %v724
      %v813 = vunpack.c.l.b16 %v725
      %v814 = vunpack.c.h.b16 %v725
      %v815 = vunpack.c.l.b16 %v726
      %v816 = vunpack.c.h.b16 %v726
      %v817 = vunpack.c.l.b16 %v727
      %v818 = vunpack.c.h.b16 %v727
      %v819 = vunpack.c.l.b16 %v728
      %v820 = vunpack.c.h.b16 %v728
      %v821 = vunpack.c.l.b16 %v729
      %v822 = vunpack.c.h.b16 %v729
      %v823 = vunpack.c.l.b16 %v730
      %v824 = vunpack.c.h.b16 %v730
      %v825 = vunpack.c.l.b16 %v731
      %v826 = vunpack.c.h.b16 %v731
      %v827 = vunpack.c.l.b16 %v732
      %v828 = vunpack.c.h.b16 %v732
      %v829 = vpack.c.b16 %v769, %v765
      %v830 = vpack.c.b16 %v770, %v766
      %v831 = vpack.c.b16 %v771, %v767
      %v832 = vpack.c.b16 %v772, %v768
      %v833 = vpack.c.b16 %v777, %v773
      %v834 = vpack.c.b16 %v778, %v774
      %v835 = vpack.c.b16 %v779, %v775
      %v836 = vpack.c.b16 %v780, %v776
      %v837 = vpack.c.b16 %v785, %v781
      %v838 = vpack.c.b16 %v786, %v782
      %v839 = vpack.c.b16 %v787, %v783
      %v840 = vpack.c.b16 %v788, %v784
      %v841 = vpack.c.b16 %v793, %v789
      %v842 = vpack.c.b16 %v794, %v790
      %v843 = vpack.c.b16 %v795, %v791
      %v844 = vpack.c.b16 %v796, %v792
      %v845 = vpack.c.b16 %v801, %v797
      %v846 = vpack.c.b16 %v802, %v798
      %v847 = vpack.c.b16 %v803, %v799
      %v848 = vpack.c.b16 %v804, %v800
      %v849 = vpack.c.b16 %v809, %v805
      %v850 = vpack.c.b16 %v810, %v806
      %v851 = vpack.c.b16 %v811, %v807
      %v852 = vpack.c.b16 %v812, %v808
      %v853 = vpack.c.b16 %v817, %v813
      %v854 = vpack.c.b16 %v818, %v814
      %v855 = vpack.c.b16 %v819, %v815
      %v856 = vpack.c.b16 %v820, %v816
      %v857 = vpack.c.b16 %v825, %v821
      %v858 = vpack.c.b16 %v826, %v822
      %v859 = vpack.c.b16 %v827, %v823
      %v860 = vpack.c.b16 %v828, %v824
      %893 = vmatprep.subr.bf16.mxu0 %v830
      %894 = vmatpush1.bf16.msra.mxu0 %v829
      %895 = vmatprep.subr.bf16.mxu0 %v834
      %896 = vmatpush1.bf16.msra.mxu0 %v833
      %897 = vmatprep.subr.bf16.mxu0 %v838
      %898 = vmatpush1.bf16.msra.mxu0 %v837
      %899 = vmatprep.subr.bf16.mxu0 %v842
      %900 = vmatpush1.bf16.msra.mxu0 %v841
      %901 = vmatprep.subr.bf16.mxu0 %v846
      %902 = vmatpush1.bf16.msra.mxu0 %v845
      %903 = vmatprep.subr.bf16.mxu0 %v850
      %904 = vmatpush1.bf16.msra.mxu0 %v849
      %905 = vmatprep.subr.bf16.mxu0 %v854
      %906 = vmatpush1.bf16.msra.mxu0 %v853
      %907 = vmatprep.subr.bf16.mxu0 %v858
      %908 = vmatpush1.bf16.msra.mxu0 %v857
      %909 = vmatprep.subr.bf16.mxu0 0
      %910 = vmatpush1.bf16.msra.mxu0 0
      %911 = vmatprep.subr.bf16.mxu0 0
      %912 = vmatpush1.bf16.msra.mxu0 0
      %913 = vmatprep.subr.bf16.mxu0 0
      %914 = vmatpush1.bf16.msra.mxu0 0
      %915 = vmatprep.subr.bf16.mxu0 0
      %916 = vmatpush1.bf16.msra.mxu0 0
      %917 = vmatprep.subr.bf16.mxu0 0
      %918 = vmatpush1.bf16.msra.mxu0 0
      %919 = vmatprep.subr.bf16.mxu0 0
      %920 = vmatpush1.bf16.msra.mxu0 0
      %921 = vmatprep.subr.bf16.mxu0 0
      %922 = vmatpush1.bf16.msra.mxu0 0
      %923 = vmatprep.subr.bf16.mxu0 0
      %924 = vmatpush1.bf16.msra.mxu0 0
      %925 = vmatprep.mubr.bf16.mxu0 0
      %926 = vmatmul.mubr.bf16.gmra.mrb[0].mxu0 %v645
      %v927 = vpop.f32.mrb[0].mxu0
      %v928 = vadd.f32 0.0, %v927
      %v929 = vpop.f32.mrb[0].mxu0
      %v930 = vadd.f32 0.0, %v929
      %v931 = vpop.f32.mrb[0].mxu0
      %v932 = vadd.f32 0.0, %v931
      %v933 = vpop.f32.mrb[0].mxu0
      %v934 = vadd.f32 0.0, %v933
      %935 = vmatprep.mubr.bf16.mxu0 0
      %936 = vmatmul.mubr.bf16.gmra.mrb[0].mxu0 %v646
      %v937 = vpop.f32.mrb[0].mxu0
      %v938 = vadd.f32 0.0, %v937
      %v939 = vpop.f32.mrb[0].mxu0
      %v940 = vadd.f32 0.0, %v939
      %v941 = vpop.f32.mrb[0].mxu0
      %v942 = vadd.f32 0.0, %v941
      %v943 = vpop.f32.mrb[0].mxu0
      %v944 = vadd.f32 0.0, %v943
      %945 = vmatprep.mubr.bf16.mxu0 0
      %946 = vmatmul.mubr.bf16.gmra.mrb[0].mxu0 %v647
      %v947 = vpop.f32.mrb[0].mxu0
      %v948 = vadd.f32 0.0, %v947
      %v949 = vpop.f32.mrb[0].mxu0
      %v950 = vadd.f32 0.0, %v949
      %v951 = vpop.f32.mrb[0].mxu0
      %v952 = vadd.f32 0.0, %v951
      %v953 = vpop.f32.mrb[0].mxu0
      %v954 = vadd.f32 0.0, %v953
      %955 = vmatprep.mubr.bf16.mxu0 0
      %956 = vmatmul.mubr.bf16.gmra.mrb[0].mxu0 %v648
      %v957 = vpop.f32.mrb[0].mxu0
      %v958 = vadd.f32 0.0, %v957
      %v959 = vpop.f32.mrb[0].mxu0
      %v960 = vadd.f32 0.0, %v959
      %v961 = vpop.f32.mrb[0].mxu0
      %v962 = vadd.f32 0.0, %v961
      %v963 = vpop.f32.mrb[0].mxu0
      %v964 = vadd.f32 0.0, %v963
      %965 = vmatprep.mubr.bf16.mxu0 0
      %966 = vmatmul.mubr.bf16.gmra.mrb[0].mxu0 %v649
      %v967 = vpop.f32.mrb[0].mxu0
      %v968 = vadd.f32 0.0, %v967
      %v969 = vpop.f32.mrb[0].mxu0
      %v970 = vadd.f32 0.0, %v969
      %v971 = vpop.f32.mrb[0].mxu0
      %v972 = vadd.f32 0.0, %v971
      %v973 = vpop.f32.mrb[0].mxu0
      %v974 = vadd.f32 0.0, %v973
      %975 = vmatprep.mubr.bf16.mxu0 0
      %976 = vmatmul.mubr.bf16.gmra.mrb[0].mxu0 %v650
      %v977 = vpop.f32.mrb[0].mxu0
      %v978 = vadd.f32 0.0, %v977
      %v979 = vpop.f32.mrb[0].mxu0
      %v980 = vadd.f32 0.0, %v979
      %v981 = vpop.f32.mrb[0].mxu0
      %v982 = vadd.f32 0.0, %v981
      %v983 = vpop.f32.mrb[0].mxu0
      %v984 = vadd.f32 0.0, %v983
      %985 = vmatprep.mubr.bf16.mxu0 0
      %986 = vmatmul.mubr.bf16.gmra.mrb[0].mxu0 %v651
      %v987 = vpop.f32.mrb[0].mxu0
      %v988 = vadd.f32 0.0, %v987
      %v989 = vpop.f32.mrb[0].mxu0
      %v990 = vadd.f32 0.0, %v989
      %v991 = vpop.f32.mrb[0].mxu0
      %v992 = vadd.f32 0.0, %v991
      %v993 = vpop.f32.mrb[0].mxu0
      %v994 = vadd.f32 0.0, %v993
      %995 = vmatprep.mubr.bf16.mxu0 0
      %996 = vmatmul.mubr.bf16.gmra.mrb[0].mxu0 %v652
      %v997 = vpop.f32.mrb[0].mxu0
      %v998 = vadd.f32 0.0, %v997
      %v999 = vpop.f32.mrb[0].mxu0
      %v1000 = vadd.f32 0.0, %v999
      %v1001 = vpop.f32.mrb[0].mxu0
      %v1002 = vadd.f32 0.0, %v1001
      %v1003 = vpop.f32.mrb[0].mxu0
      %v1004 = vadd.f32 0.0, %v1003
      %1005 = vdwg.mxu0
      %1006 = vmatprep.subr.bf16.mxu0 %v832
      %1007 = vmatpush1.bf16.msra.mxu0 %v831
      %1008 = vmatprep.subr.bf16.mxu0 %v836
      %1009 = vmatpush1.bf16.msra.mxu0 %v835
      %1010 = vmatprep.subr.bf16.mxu0 %v840
      %1011 = vmatpush1.bf16.msra.mxu0 %v839
      %1012 = vmatprep.subr.bf16.mxu0 %v844
      %1013 = vmatpush1.bf16.msra.mxu0 %v843
      %1014 = vmatprep.subr.bf16.mxu0 %v848
      %1015 = vmatpush1.bf16.msra.mxu0 %v847
      %1016 = vmatprep.subr.bf16.mxu0 %v852
      %1017 = vmatpush1.bf16.msra.mxu0 %v851
      %1018 = vmatprep.subr.bf16.mxu0 %v856
      %1019 = vmatpush1.bf16.msra.mxu0 %v855
      %1020 = vmatprep.subr.bf16.mxu0 %v860
      %1021 = vmatpush1.bf16.msra.mxu0 %v859
      %1022 = vmatprep.subr.bf16.mxu0 0
      %1023 = vmatpush1.bf16.msra.mxu0 0
      %1024 = vmatprep.subr.bf16.mxu0 0
      %1025 = vmatpush1.bf16.msra.mxu0 0
      %1026 = vmatprep.subr.bf16.mxu0 0
      %1027 = vmatpush1.bf16.msra.mxu0 0
      %1028 = vmatprep.subr.bf16.mxu0 0
      %1029 = vmatpush1.bf16.msra.mxu0 0
      %1030 = vmatprep.subr.bf16.mxu0 0
      %1031 = vmatpush1.bf16.msra.mxu0 0
      %1032 = vmatprep.subr.bf16.mxu0 0
      %1033 = vmatpush1.bf16.msra.mxu0 0
      %1034 = vmatprep.subr.bf16.mxu0 0
      %1035 = vmatpush1.bf16.msra.mxu0 0
      %1036 = vmatprep.subr.bf16.mxu0 0
      %1037 = vmatpush1.bf16.msra.mxu0 0
      %1038 = vmatprep.mubr.bf16.mxu0 0
      %1039 = vmatmul.mubr.bf16.gmra.mrb[0].mxu0 %v645
      %v1040 = vpop.f32.mrb[0].mxu0
      %v1041 = vadd.f32 0.0, %v1040
      %v1042 = vpop.f32.mrb[0].mxu0
      %v1043 = vadd.f32 0.0, %v1042
      %v1044 = vpop.f32.mrb[0].mxu0
      %v1045 = vadd.f32 0.0, %v1044
      %v1046 = vpop.f32.mrb[0].mxu0
      %v1047 = vadd.f32 0.0, %v1046
      %1048 = vmatprep.mubr.bf16.mxu0 0
      %1049 = vmatmul.mubr.bf16.gmra.mrb[0].mxu0 %v646
      %v1050 = vpop.f32.mrb[0].mxu0
      %v1051 = vadd.f32 0.0, %v1050
      %v1052 = vpop.f32.mrb[0].mxu0
      %v1053 = vadd.f32 0.0, %v1052
      %v1054 = vpop.f32.mrb[0].mxu0
      %v1055 = vadd.f32 0.0, %v1054
      %v1056 = vpop.f32.mrb[0].mxu0
      %v1057 = vadd.f32 0.0, %v1056
      %1058 = vmatprep.mubr.bf16.mxu0 0
      %1059 = vmatmul.mubr.bf16.gmra.mrb[0].mxu0 %v647
      %v1060 = vpop.f32.mrb[0].mxu0
      %v1061 = vadd.f32 0.0, %v1060
      %v1062 = vpop.f32.mrb[0].mxu0
      %v1063 = vadd.f32 0.0, %v1062
      %v1064 = vpop.f32.mrb[0].mxu0
      %v1065 = vadd.f32 0.0, %v1064
      %v1066 = vpop.f32.mrb[0].mxu0
      %v1067 = vadd.f32 0.0, %v1066
      %1068 = vmatprep.mubr.bf16.mxu0 0
      %1069 = vmatmul.mubr.bf16.gmra.mrb[0].mxu0 %v648
      %v1070 = vpop.f32.mrb[0].mxu0
      %v1071 = vadd.f32 0.0, %v1070
      %v1072 = vpop.f32.mrb[0].mxu0
      %v1073 = vadd.f32 0.0, %v1072
      %v1074 = vpop.f32.mrb[0].mxu0
      %v1075 = vadd.f32 0.0, %v1074
      %v1076 = vpop.f32.mrb[0].mxu0
      %v1077 = vadd.f32 0.0, %v1076
      %1078 = vmatprep.mubr.bf16.mxu0 0
      %1079 = vmatmul.mubr.bf16.gmra.mrb[0].mxu0 %v649
      %v1080 = vpop.f32.mrb[0].mxu0
      %v1081 = vadd.f32 0.0, %v1080
      %v1082 = vpop.f32.mrb[0].mxu0
      %v1083 = vadd.f32 0.0, %v1082
      %v1084 = vpop.f32.mrb[0].mxu0
      %v1085 = vadd.f32 0.0, %v1084
      %v1086 = vpop.f32.mrb[0].mxu0
      %v1087 = vadd.f32 0.0, %v1086
      %1088 = vmatprep.mubr.bf16.mxu0 0
      %1089 = vmatmul.mubr.bf16.gmra.mrb[0].mxu0 %v650
      %v1090 = vpop.f32.mrb[0].mxu0
      %v1091 = vadd.f32 0.0, %v1090
      %v1092 = vpop.f32.mrb[0].mxu0
      %v1093 = vadd.f32 0.0, %v1092
      %v1094 = vpop.f32.mrb[0].mxu0
      %v1095 = vadd.f32 0.0, %v1094
      %v1096 = vpop.f32.mrb[0].mxu0
      %v1097 = vadd.f32 0.0, %v1096
      %1098 = vmatprep.mubr.bf16.mxu0 0
      %1099 = vmatmul.mubr.bf16.gmra.mrb[0].mxu0 %v651
      %v1100 = vpop.f32.mrb[0].mxu0
      %v1101 = vadd.f32 0.0, %v1100
      %v1102 = vpop.f32.mrb[0].mxu0
      %v1103 = vadd.f32 0.0, %v1102
      %v1104 = vpop.f32.mrb[0].mxu0
      %v1105 = vadd.f32 0.0, %v1104
      %v1106 = vpop.f32.mrb[0].mxu0
      %v1107 = vadd.f32 0.0, %v1106
      %1108 = vmatprep.mubr.bf16.mxu0 0
      %1109 = vmatmul.mubr.bf16.gmra.mrb[0].mxu0 %v652
      %v1110 = vpop.f32.mrb[0].mxu0
      %v1111 = vadd.f32 0.0, %v1110
      %v1112 = vpop.f32.mrb[0].mxu0
      %v1113 = vadd.f32 0.0, %v1112
      %v1114 = vpop.f32.mrb[0].mxu0
      %v1115 = vadd.f32 0.0, %v1114
      %v1116 = vpop.f32.mrb[0].mxu0
      %v1117 = vadd.f32 0.0, %v1116
      %1118 = vdwg.mxu0
      %v1135 = vunpack.c.l.b16 %v653
      %v1136 = vunpack.c.l.b16 %v654
      %v1137 = vunpack.c.l.b16 %v655
      %v1138 = vunpack.c.l.b16 %v656
      %v1139 = vunpack.c.l.b16 %v657
      %v1140 = vunpack.c.l.b16 %v658
      %v1141 = vunpack.c.l.b16 %v659
      %v1142 = vunpack.c.l.b16 %v660
      %v1143 = vunpack.c.l.b16 %v661
      %v1144 = vunpack.c.l.b16 %v662
      %v1145 = vunpack.c.l.b16 %v663
      %v1146 = vunpack.c.l.b16 %v664
      %v1147 = vunpack.c.l.b16 %v665
      %v1148 = vunpack.c.l.b16 %v666
      %v1149 = vunpack.c.l.b16 %v667
      %v1150 = vunpack.c.l.b16 %v668
      %v1151 = vpack.c.b16 %v1136, %v1135
      %v1152 = vpack.c.b16 %v1138, %v1137
      %v1153 = vpack.c.b16 %v1140, %v1139
      %v1154 = vpack.c.b16 %v1142, %v1141
      %v1155 = vpack.c.b16 %v1144, %v1143
      %v1156 = vpack.c.b16 %v1146, %v1145
      %v1157 = vpack.c.b16 %v1148, %v1147
      %v1158 = vpack.c.b16 %v1150, %v1149
      %v1199 = vunpack.c.l.b16 %v669
      %v1200 = vunpack.c.h.b16 %v669
      %v1201 = vunpack.c.l.b16 %v670
      %v1202 = vunpack.c.h.b16 %v670
      %v1203 = vunpack.c.l.b16 %v671
      %v1204 = vunpack.c.h.b16 %v671
      %v1205 = vunpack.c.l.b16 %v672
      %v1206 = vunpack.c.h.b16 %v672
      %v1207 = vunpack.c.l.b16 %v673
      %v1208 = vunpack.c.h.b16 %v673
      %v1209 = vunpack.c.l.b16 %v674
      %v1210 = vunpack.c.h.b16 %v674
      %v1211 = vunpack.c.l.b16 %v675
      %v1212 = vunpack.c.h.b16 %v675
      %v1213 = vunpack.c.l.b16 %v676
      %v1214 = vunpack.c.h.b16 %v676
      %v1215 = vunpack.c.l.b16 %v677
      %v1216 = vunpack.c.h.b16 %v677
      %v1217 = vunpack.c.l.b16 %v678
      %v1218 = vunpack.c.h.b16 %v678
      %v1219 = vunpack.c.l.b16 %v679
      %v1220 = vunpack.c.h.b16 %v679
      %v1221 = vunpack.c.l.b16 %v680
      %v1222 = vunpack.c.h.b16 %v680
      %v1223 = vunpack.c.l.b16 %v681
      %v1224 = vunpack.c.h.b16 %v681
      %v1225 = vunpack.c.l.b16 %v682
      %v1226 = vunpack.c.h.b16 %v682
      %v1227 = vunpack.c.l.b16 %v683
      %v1228 = vunpack.c.h.b16 %v683
      %v1229 = vunpack.c.l.b16 %v684
      %v1230 = vunpack.c.h.b16 %v684
      %v1231 = vunpack.c.l.b16 %v685
      %v1232 = vunpack.c.h.b16 %v685
      %v1233 = vunpack.c.l.b16 %v686
      %v1234 = vunpack.c.h.b16 %v686
      %v1235 = vunpack.c.l.b16 %v687
      %v1236 = vunpack.c.h.b16 %v687
      %v1237 = vunpack.c.l.b16 %v688
      %v1238 = vunpack.c.h.b16 %v688
      %v1239 = vunpack.c.l.b16 %v689
      %v1240 = vunpack.c.h.b16 %v689
      %v1241 = vunpack.c.l.b16 %v690
      %v1242 = vunpack.c.h.b16 %v690
      %v1243 = vunpack.c.l.b16 %v691
      %v1244 = vunpack.c.h.b16 %v691
      %v1245 = vunpack.c.l.b16 %v692
      %v1246 = vunpack.c.h.b16 %v692
      %v1247 = vunpack.c.l.b16 %v693
      %v1248 = vunpack.c.h.b16 %v693
      %v1249 = vunpack.c.l.b16 %v694
      %v1250 = vunpack.c.h.b16 %v694
      %v1251 = vunpack.c.l.b16 %v695
      %v1252 = vunpack.c.h.b16 %v695
      %v1253 = vunpack.c.l.b16 %v696
      %v1254 = vunpack.c.h.b16 %v696
      %v1255 = vunpack.c.l.b16 %v697
      %v1256 = vunpack.c.h.b16 %v697
      %v1257 = vunpack.c.l.b16 %v698
      %v1258 = vunpack.c.h.b16 %v698
      %v1259 = vunpack.c.l.b16 %v699
      %v1260 = vunpack.c.h.b16 %v699
      %v1261 = vunpack.c.l.b16 %v700
      %v1262 = vunpack.c.h.b16 %v700
      %v1263 = vpack.c.b16 %v1203, %v1199
      %v1264 = vpack.c.b16 %v1204, %v1200
      %v1265 = vpack.c.b16 %v1205, %v1201
      %v1266 = vpack.c.b16 %v1206, %v1202
      %v1267 = vpack.c.b16 %v1211, %v1207
      %v1268 = vpack.c.b16 %v1212, %v1208
      %v1269 = vpack.c.b16 %v1213, %v1209
      %v1270 = vpack.c.b16 %v1214, %v1210
      %v1271 = vpack.c.b16 %v1219, %v1215
      %v1272 = vpack.c.b16 %v1220, %v1216
      %v1273 = vpack.c.b16 %v1221, %v1217
      %v1274 = vpack.c.b16 %v1222, %v1218
      %v1275 = vpack.c.b16 %v1227, %v1223
      %v1276 = vpack.c.b16 %v1228, %v1224
      %v1277 = vpack.c.b16 %v1229, %v1225
      %v1278 = vpack.c.b16 %v1230, %v1226
      %v1279 = vpack.c.b16 %v1235, %v1231
      %v1280 = vpack.c.b16 %v1236, %v1232
      %v1281 = vpack.c.b16 %v1237, %v1233
      %v1282 = vpack.c.b16 %v1238, %v1234
      %v1283 = vpack.c.b16 %v1243, %v1239
      %v1284 = vpack.c.b16 %v1244, %v1240
      %v1285 = vpack.c.b16 %v1245, %v1241
      %v1286 = vpack.c.b16 %v1246, %v1242
      %v1287 = vpack.c.b16 %v1251, %v1247
      %v1288 = vpack.c.b16 %v1252, %v1248
      %v1289 = vpack.c.b16 %v1253, %v1249
      %v1290 = vpack.c.b16 %v1254, %v1250
      %v1291 = vpack.c.b16 %v1259, %v1255
      %v1292 = vpack.c.b16 %v1260, %v1256
      %v1293 = vpack.c.b16 %v1261, %v1257
      %v1294 = vpack.c.b16 %v1262, %v1258
      %1327 = vmatprep.subr.bf16.mxu0 %v1264
      %1328 = vmatpush1.bf16.msra.mxu0 %v1263
      %1329 = vmatprep.subr.bf16.mxu0 %v1268
      %1330 = vmatpush1.bf16.msra.mxu0 %v1267
      %1331 = vmatprep.subr.bf16.mxu0 %v1272
      %1332 = vmatpush1.bf16.msra.mxu0 %v1271
      %1333 = vmatprep.subr.bf16.mxu0 %v1276
      %1334 = vmatpush1.bf16.msra.mxu0 %v1275
      %1335 = vmatprep.subr.bf16.mxu0 %v1280
      %1336 = vmatpush1.bf16.msra.mxu0 %v1279
      %1337 = vmatprep.subr.bf16.mxu0 %v1284
      %1338 = vmatpush1.bf16.msra.mxu0 %v1283
      %1339 = vmatprep.subr.bf16.mxu0 %v1288
      %1340 = vmatpush1.bf16.msra.mxu0 %v1287
      %1341 = vmatprep.subr.bf16.mxu0 %v1292
      %1342 = vmatpush1.bf16.msra.mxu0 %v1291
      %1343 = vmatprep.subr.bf16.mxu0 0
      %1344 = vmatpush1.bf16.msra.mxu0 0
      %1345 = vmatprep.subr.bf16.mxu0 0
      %1346 = vmatpush1.bf16.msra.mxu0 0
      %1347 = vmatprep.subr.bf16.mxu0 0
      %1348 = vmatpush1.bf16.msra.mxu0 0
      %1349 = vmatprep.subr.bf16.mxu0 0
      %1350 = vmatpush1.bf16.msra.mxu0 0
      %1351 = vmatprep.subr.bf16.mxu0 0
      %1352 = vmatpush1.bf16.msra.mxu0 0
      %1353 = vmatprep.subr.bf16.mxu0 0
      %1354 = vmatpush1.bf16.msra.mxu0 0
      %1355 = vmatprep.subr.bf16.mxu0 0
      %1356 = vmatpush1.bf16.msra.mxu0 0
      %1357 = vmatprep.subr.bf16.mxu0 0
      %1358 = vmatpush1.bf16.msra.mxu0 0
      %1359 = vmatprep.mubr.bf16.mxu0 0
      %1360 = vmatmul.mubr.bf16.gmra.mrb[0].mxu0 %v1151
      %v1361 = vpop.f32.mrb[0].mxu0
      %v1362 = vadd.f32 %v928, %v1361
      %v1363 = vpop.f32.mrb[0].mxu0
      %v1364 = vadd.f32 %v930, %v1363
      %v1365 = vpop.f32.mrb[0].mxu0
      %v1366 = vadd.f32 %v932, %v1365
      %v1367 = vpop.f32.mrb[0].mxu0
      %v1368 = vadd.f32 %v934, %v1367
      %1369 = vmatprep.mubr.bf16.mxu0 0
      %1370 = vmatmul.mubr.bf16.gmra.mrb[0].mxu0 %v1152
      %v1371 = vpop.f32.mrb[0].mxu0
      %v1372 = vadd.f32 %v938, %v1371
      %v1373 = vpop.f32.mrb[0].mxu0
      %v1374 = vadd.f32 %v940, %v1373
      %v1375 = vpop.f32.mrb[0].mxu0
      %v1376 = vadd.f32 %v942, %v1375
      %v1377 = vpop.f32.mrb[0].mxu0
      %v1378 = vadd.f32 %v944, %v1377
      %1379 = vmatprep.mubr.bf16.mxu0 0
      %1380 = vmatmul.mubr.bf16.gmra.mrb[0].mxu0 %v1153
      %v1381 = vpop.f32.mrb[0].mxu0
      %v1382 = vadd.f32 %v948, %v1381
      %v1383 = vpop.f32.mrb[0].mxu0
      %v1384 = vadd.f32 %v950, %v1383
      %v1385 = vpop.f32.mrb[0].mxu0
      %v1386 = vadd.f32 %v952, %v1385
      %v1387 = vpop.f32.mrb[0].mxu0
      %v1388 = vadd.f32 %v954, %v1387
      %1389 = vmatprep.mubr.bf16.mxu0 0
      %1390 = vmatmul.mubr.bf16.gmra.mrb[0].mxu0 %v1154
      %v1391 = vpop.f32.mrb[0].mxu0
      %v1392 = vadd.f32 %v958, %v1391
      %v1393 = vpop.f32.mrb[0].mxu0
      %v1394 = vadd.f32 %v960, %v1393
      %v1395 = vpop.f32.mrb[0].mxu0
      %v1396 = vadd.f32 %v962, %v1395
      %v1397 = vpop.f32.mrb[0].mxu0
      %v1398 = vadd.f32 %v964, %v1397
      %1399 = vmatprep.mubr.bf16.mxu0 0
      %1400 = vmatmul.mubr.bf16.gmra.mrb[0].mxu0 %v1155
      %v1401 = vpop.f32.mrb[0].mxu0
      %v1402 = vadd.f32 %v968, %v1401
      %v1403 = vpop.f32.mrb[0].mxu0
      %v1404 = vadd.f32 %v970, %v1403
      %v1405 = vpop.f32.mrb[0].mxu0
      %v1406 = vadd.f32 %v972, %v1405
      %v1407 = vpop.f32.mrb[0].mxu0
      %v1408 = vadd.f32 %v974, %v1407
      %1409 = vmatprep.mubr.bf16.mxu0 0
      %1410 = vmatmul.mubr.bf16.gmra.mrb[0].mxu0 %v1156
      %v1411 = vpop.f32.mrb[0].mxu0
      %v1412 = vadd.f32 %v978, %v1411
      %v1413 = vpop.f32.mrb[0].mxu0
      %v1414 = vadd.f32 %v980, %v1413
      %v1415 = vpop.f32.mrb[0].mxu0
      %v1416 = vadd.f32 %v982, %v1415
      %v1417 = vpop.f32.mrb[0].mxu0
      %v1418 = vadd.f32 %v984, %v1417
      %1419 = vmatprep.mubr.bf16.mxu0 0
      %1420 = vmatmul.mubr.bf16.gmra.mrb[0].mxu0 %v1157
      %v1421 = vpop.f32.mrb[0].mxu0
      %v1422 = vadd.f32 %v988, %v1421
      %v1423 = vpop.f32.mrb[0].mxu0
      %v1424 = vadd.f32 %v990, %v1423
      %v1425 = vpop.f32.mrb[0].mxu0
      %v1426 = vadd.f32 %v992, %v1425
      %v1427 = vpop.f32.mrb[0].mxu0
      %v1428 = vadd.f32 %v994, %v1427
      %1429 = vmatprep.mubr.bf16.mxu0 0
      %1430 = vmatmul.mubr.bf16.gmra.mrb[0].mxu0 %v1158
      %v1431 = vpop.f32.mrb[0].mxu0
      %v1432 = vadd.f32 %v998, %v1431
      %v1433 = vpop.f32.mrb[0].mxu0
      %v1434 = vadd.f32 %v1000, %v1433
      %v1435 = vpop.f32.mrb[0].mxu0
      %v1436 = vadd.f32 %v1002, %v1435
      %v1437 = vpop.f32.mrb[0].mxu0
      %v1438 = vadd.f32 %v1004, %v1437
      %1439 = vdwg.mxu0
      %1440 = vmatprep.subr.bf16.mxu0 %v1266
      %1441 = vmatpush1.bf16.msra.mxu0 %v1265
      %1442 = vmatprep.subr.bf16.mxu0 %v1270
      %1443 = vmatpush1.bf16.msra.mxu0 %v1269
      %1444 = vmatprep.subr.bf16.mxu0 %v1274
      %1445 = vmatpush1.bf16.msra.mxu0 %v1273
      %1446 = vmatprep.subr.bf16.mxu0 %v1278
      %1447 = vmatpush1.bf16.msra.mxu0 %v1277
      %1448 = vmatprep.subr.bf16.mxu0 %v1282
      %1449 = vmatpush1.bf16.msra.mxu0 %v1281
      %1450 = vmatprep.subr.bf16.mxu0 %v1286
      %1451 = vmatpush1.bf16.msra.mxu0 %v1285
      %1452 = vmatprep.subr.bf16.mxu0 %v1290
      %1453 = vmatpush1.bf16.msra.mxu0 %v1289
      %1454 = vmatprep.subr.bf16.mxu0 %v1294
      %1455 = vmatpush1.bf16.msra.mxu0 %v1293
      %1456 = vmatprep.subr.bf16.mxu0 0
      %1457 = vmatpush1.bf16.msra.mxu0 0
      %1458 = vmatprep.subr.bf16.mxu0 0
      %1459 = vmatpush1.bf16.msra.mxu0 0
      %1460 = vmatprep.subr.bf16.mxu0 0
      %1461 = vmatpush1.bf16.msra.mxu0 0
      %1462 = vmatprep.subr.bf16.mxu0 0
      %1463 = vmatpush1.bf16.msra.mxu0 0
      %1464 = vmatprep.subr.bf16.mxu0 0
      %1465 = vmatpush1.bf16.msra.mxu0 0
      %1466 = vmatprep.subr.bf16.mxu0 0
      %1467 = vmatpush1.bf16.msra.mxu0 0
      %1468 = vmatprep.subr.bf16.mxu0 0
      %1469 = vmatpush1.bf16.msra.mxu0 0
      %1470 = vmatprep.subr.bf16.mxu0 0
      %1471 = vmatpush1.bf16.msra.mxu0 0
      %1472 = vmatprep.mubr.bf16.mxu0 0
      %1473 = vmatmul.mubr.bf16.gmra.mrb[0].mxu0 %v1151
      %v1474 = vpop.f32.mrb[0].mxu0
      %v1475 = vadd.f32 %v1041, %v1474
      %v1476 = vpop.f32.mrb[0].mxu0
      %v1477 = vadd.f32 %v1043, %v1476
      %v1478 = vpop.f32.mrb[0].mxu0
      %v1479 = vadd.f32 %v1045, %v1478
      %v1480 = vpop.f32.mrb[0].mxu0
      %v1481 = vadd.f32 %v1047, %v1480
      %1482 = vmatprep.mubr.bf16.mxu0 0
      %1483 = vmatmul.mubr.bf16.gmra.mrb[0].mxu0 %v1152
      %v1484 = vpop.f32.mrb[0].mxu0
      %v1485 = vadd.f32 %v1051, %v1484
      %v1486 = vpop.f32.mrb[0].mxu0
      %v1487 = vadd.f32 %v1053, %v1486
      %v1488 = vpop.f32.mrb[0].mxu0
      %v1489 = vadd.f32 %v1055, %v1488
      %v1490 = vpop.f32.mrb[0].mxu0
      %v1491 = vadd.f32 %v1057, %v1490
      %1492 = vmatprep.mubr.bf16.mxu0 0
      %1493 = vmatmul.mubr.bf16.gmra.mrb[0].mxu0 %v1153
      %v1494 = vpop.f32.mrb[0].mxu0
      %v1495 = vadd.f32 %v1061, %v1494
      %v1496 = vpop.f32.mrb[0].mxu0
      %v1497 = vadd.f32 %v1063, %v1496
      %v1498 = vpop.f32.mrb[0].mxu0
      %v1499 = vadd.f32 %v1065, %v1498
      %v1500 = vpop.f32.mrb[0].mxu0
      %v1501 = vadd.f32 %v1067, %v1500
      %1502 = vmatprep.mubr.bf16.mxu0 0
      %1503 = vmatmul.mubr.bf16.gmra.mrb[0].mxu0 %v1154
      %v1504 = vpop.f32.mrb[0].mxu0
      %v1505 = vadd.f32 %v1071, %v1504
      %v1506 = vpop.f32.mrb[0].mxu0
      %v1507 = vadd.f32 %v1073, %v1506
      %v1508 = vpop.f32.mrb[0].mxu0
      %v1509 = vadd.f32 %v1075, %v1508
      %v1510 = vpop.f32.mrb[0].mxu0
      %v1511 = vadd.f32 %v1077, %v1510
      %1512 = vmatprep.mubr.bf16.mxu0 0
      %1513 = vmatmul.mubr.bf16.gmra.mrb[0].mxu0 %v1155
      %v1514 = vpop.f32.mrb[0].mxu0
      %v1515 = vadd.f32 %v1081, %v1514
      %v1516 = vpop.f32.mrb[0].mxu0
      %v1517 = vadd.f32 %v1083, %v1516
      %v1518 = vpop.f32.mrb[0].mxu0
      %v1519 = vadd.f32 %v1085, %v1518
      %v1520 = vpop.f32.mrb[0].mxu0
      %v1521 = vadd.f32 %v1087, %v1520
      %1522 = vmatprep.mubr.bf16.mxu0 0
      %1523 = vmatmul.mubr.bf16.gmra.mrb[0].mxu0 %v1156
      %v1524 = vpop.f32.mrb[0].mxu0
      %v1525 = vadd.f32 %v1091, %v1524
      %v1526 = vpop.f32.mrb[0].mxu0
      %v1527 = vadd.f32 %v1093, %v1526
      %v1528 = vpop.f32.mrb[0].mxu0
      %v1529 = vadd.f32 %v1095, %v1528
      %v1530 = vpop.f32.mrb[0].mxu0
      %v1531 = vadd.f32 %v1097, %v1530
      %1532 = vmatprep.mubr.bf16.mxu0 0
      %1533 = vmatmul.mubr.bf16.gmra.mrb[0].mxu0 %v1157
      %v1534 = vpop.f32.mrb[0].mxu0
      %v1535 = vadd.f32 %v1101, %v1534
      %v1536 = vpop.f32.mrb[0].mxu0
      %v1537 = vadd.f32 %v1103, %v1536
      %v1538 = vpop.f32.mrb[0].mxu0
      %v1539 = vadd.f32 %v1105, %v1538
      %v1540 = vpop.f32.mrb[0].mxu0
      %v1541 = vadd.f32 %v1107, %v1540
      %1542 = vmatprep.mubr.bf16.mxu0 0
      %1543 = vmatmul.mubr.bf16.gmra.mrb[0].mxu0 %v1158
      %v1544 = vpop.f32.mrb[0].mxu0
      %v1545 = vadd.f32 %v1111, %v1544
      %v1546 = vpop.f32.mrb[0].mxu0
      %v1547 = vadd.f32 %v1113, %v1546
      %v1548 = vpop.f32.mrb[0].mxu0
      %v1549 = vadd.f32 %v1115, %v1548
      %v1550 = vpop.f32.mrb[0].mxu0
      %v1551 = vadd.f32 %v1117, %v1550
      %1552 = vdwg.mxu0
      %v1553 = vld [vmem:[%s5] sm:$0xf]
      %v1555 = vlaneseq
      %v1556 = vshrl.u32 %v1555, 7
      %v1557 = vsub.s32 0, %v1556
      %v1558 = vrot.slane %v1553, %v1557
      %v1559 = vlaneseq
      %v1560 = vshrl.u32 %v1559, 7
      %v1561 = vsub.s32 1, %v1560
      %v1562 = vrot.slane %v1553, %v1561
      %v1563 = vlaneseq
      %v1564 = vshrl.u32 %v1563, 7
      %v1565 = vsub.s32 2, %v1564
      %v1566 = vrot.slane %v1553, %v1565
      %v1567 = vlaneseq
      %v1568 = vshrl.u32 %v1567, 7
      %v1569 = vsub.s32 3, %v1568
      %v1570 = vrot.slane %v1553, %v1569
      %v1575 = vadd.f32 %v1362, %v1558
      %v1576 = vadd.f32 %v1364, %v1562
      %v1577 = vadd.f32 %v1475, %v1566
      %v1578 = vadd.f32 %v1477, %v1570
      %v1579 = vadd.f32 %v1366, %v1558
      %v1580 = vadd.f32 %v1368, %v1562
      %v1581 = vadd.f32 %v1479, %v1566
      %v1582 = vadd.f32 %v1481, %v1570
      %v1583 = vadd.f32 %v1372, %v1558
      %v1584 = vadd.f32 %v1374, %v1562
      %v1585 = vadd.f32 %v1485, %v1566
      %v1586 = vadd.f32 %v1487, %v1570
      %v1587 = vadd.f32 %v1376, %v1558
      %v1588 = vadd.f32 %v1378, %v1562
      %v1589 = vadd.f32 %v1489, %v1566
      %v1590 = vadd.f32 %v1491, %v1570
      %v1591 = vadd.f32 %v1382, %v1558
      %v1592 = vadd.f32 %v1384, %v1562
      %v1593 = vadd.f32 %v1495, %v1566
      %v1594 = vadd.f32 %v1497, %v1570
      %v1595 = vadd.f32 %v1386, %v1558
      %v1596 = vadd.f32 %v1388, %v1562
      %v1597 = vadd.f32 %v1499, %v1566
      %v1598 = vadd.f32 %v1501, %v1570
      %v1599 = vadd.f32 %v1392, %v1558
      %v1600 = vadd.f32 %v1394, %v1562
      %v1601 = vadd.f32 %v1505, %v1566
      %v1602 = vadd.f32 %v1507, %v1570
      %v1603 = vadd.f32 %v1396, %v1558
      %v1604 = vadd.f32 %v1398, %v1562
      %v1605 = vadd.f32 %v1509, %v1566
      %v1606 = vadd.f32 %v1511, %v1570
      %v1607 = vadd.f32 %v1402, %v1558
      %v1608 = vadd.f32 %v1404, %v1562
      %v1609 = vadd.f32 %v1515, %v1566
      %v1610 = vadd.f32 %v1517, %v1570
      %v1611 = vadd.f32 %v1406, %v1558
      %v1612 = vadd.f32 %v1408, %v1562
      %v1613 = vadd.f32 %v1519, %v1566
      %v1614 = vadd.f32 %v1521, %v1570
      %v1615 = vadd.f32 %v1412, %v1558
      %v1616 = vadd.f32 %v1414, %v1562
      %v1617 = vadd.f32 %v1525, %v1566
      %v1618 = vadd.f32 %v1527, %v1570
      %v1619 = vadd.f32 %v1416, %v1558
      %v1620 = vadd.f32 %v1418, %v1562
      %v1621 = vadd.f32 %v1529, %v1566
      %v1622 = vadd.f32 %v1531, %v1570
      %v1623 = vadd.f32 %v1422, %v1558
      %v1624 = vadd.f32 %v1424, %v1562
      %v1625 = vadd.f32 %v1535, %v1566
      %v1626 = vadd.f32 %v1537, %v1570
      %v1627 = vadd.f32 %v1426, %v1558
      %v1628 = vadd.f32 %v1428, %v1562
      %v1629 = vadd.f32 %v1539, %v1566
      %v1630 = vadd.f32 %v1541, %v1570
      %v1631 = vadd.f32 %v1432, %v1558
      %v1632 = vadd.f32 %v1434, %v1562
      %v1633 = vadd.f32 %v1545, %v1566
      %v1634 = vadd.f32 %v1547, %v1570
      %v1635 = vadd.f32 %v1436, %v1558
      %v1636 = vadd.f32 %v1438, %v1562
      %v1637 = vadd.f32 %v1549, %v1566
      %v1638 = vadd.f32 %v1551, %v1570
      %v1639 = vmax.f32 %v1575, 0.0
      %v1640 = vmax.f32 %v1576, 0.0
      %v1641 = vmax.f32 %v1577, 0.0
      %v1642 = vmax.f32 %v1578, 0.0
      %v1643 = vmax.f32 %v1579, 0.0
      %v1644 = vmax.f32 %v1580, 0.0
      %v1645 = vmax.f32 %v1581, 0.0
      %v1646 = vmax.f32 %v1582, 0.0
      %v1647 = vmax.f32 %v1583, 0.0
      %v1648 = vmax.f32 %v1584, 0.0
      %v1649 = vmax.f32 %v1585, 0.0
      %v1650 = vmax.f32 %v1586, 0.0
      %v1651 = vmax.f32 %v1587, 0.0
      %v1652 = vmax.f32 %v1588, 0.0
      %v1653 = vmax.f32 %v1589, 0.0
      %v1654 = vmax.f32 %v1590, 0.0
      %v1655 = vmax.f32 %v1591, 0.0
      %v1656 = vmax.f32 %v1592, 0.0
      %v1657 = vmax.f32 %v1593, 0.0
      %v1658 = vmax.f32 %v1594, 0.0
      %v1659 = vmax.f32 %v1595, 0.0
      %v1660 = vmax.f32 %v1596, 0.0
      %v1661 = vmax.f32 %v1597, 0.0
      %v1662 = vmax.f32 %v1598, 0.0
      %v1663 = vmax.f32 %v1599, 0.0
      %v1664 = vmax.f32 %v1600, 0.0
      %v1665 = vmax.f32 %v1601, 0.0
      %v1666 = vmax.f32 %v1602, 0.0
      %v1667 = vmax.f32 %v1603, 0.0
      %v1668 = vmax.f32 %v1604, 0.0
      %v1669 = vmax.f32 %v1605, 0.0
      %v1670 = vmax.f32 %v1606, 0.0
      %v1671 = vmax.f32 %v1607, 0.0
      %v1672 = vmax.f32 %v1608, 0.0
      %v1673 = vmax.f32 %v1609, 0.0
      %v1674 = vmax.f32 %v1610, 0.0
      %v1675 = vmax.f32 %v1611, 0.0
      %v1676 = vmax.f32 %v1612, 0.0
      %v1677 = vmax.f32 %v1613, 0.0
      %v1678 = vmax.f32 %v1614, 0.0
      %v1679 = vmax.f32 %v1615, 0.0
      %v1680 = vmax.f32 %v1616, 0.0
      %v1681 = vmax.f32 %v1617, 0.0
      %v1682 = vmax.f32 %v1618, 0.0
      %v1683 = vmax.f32 %v1619, 0.0
      %v1684 = vmax.f32 %v1620, 0.0
      %v1685 = vmax.f32 %v1621, 0.0
      %v1686 = vmax.f32 %v1622, 0.0
      %v1687 = vmax.f32 %v1623, 0.0
      %v1688 = vmax.f32 %v1624, 0.0
      %v1689 = vmax.f32 %v1625, 0.0
      %v1690 = vmax.f32 %v1626, 0.0
      %v1691 = vmax.f32 %v1627, 0.0
      %v1692 = vmax.f32 %v1628, 0.0
      %v1693 = vmax.f32 %v1629, 0.0
      %v1694 = vmax.f32 %v1630, 0.0
      %v1695 = vmax.f32 %v1631, 0.0
      %v1696 = vmax.f32 %v1632, 0.0
      %v1697 = vmax.f32 %v1633, 0.0
      %v1698 = vmax.f32 %v1634, 0.0
      %v1699 = vmax.f32 %v1635, 0.0
      %v1700 = vmax.f32 %v1636, 0.0
      %v1701 = vmax.f32 %v1637, 0.0
      %v1702 = vmax.f32 %v1638, 0.0
      %v1703 = vpack.c.bf16 %v1643, %v1639
      %v1704 = vpack.c.bf16 %v1644, %v1640
      %v1705 = vpack.c.bf16 %v1645, %v1641
      %v1706 = vpack.c.bf16 %v1646, %v1642
      %v1707 = vpack.c.bf16 %v1651, %v1647
      %v1708 = vpack.c.bf16 %v1652, %v1648
      %v1709 = vpack.c.bf16 %v1653, %v1649
      %v1710 = vpack.c.bf16 %v1654, %v1650
      %v1711 = vpack.c.bf16 %v1659, %v1655
      %v1712 = vpack.c.bf16 %v1660, %v1656
      %v1713 = vpack.c.bf16 %v1661, %v1657
      %v1714 = vpack.c.bf16 %v1662, %v1658
      %v1715 = vpack.c.bf16 %v1667, %v1663
      %v1716 = vpack.c.bf16 %v1668, %v1664
      %v1717 = vpack.c.bf16 %v1669, %v1665
      %v1718 = vpack.c.bf16 %v1670, %v1666
      %v1719 = vpack.c.bf16 %v1675, %v1671
      %v1720 = vpack.c.bf16 %v1676, %v1672
      %v1721 = vpack.c.bf16 %v1677, %v1673
      %v1722 = vpack.c.bf16 %v1678, %v1674
      %v1723 = vpack.c.bf16 %v1683, %v1679
      %v1724 = vpack.c.bf16 %v1684, %v1680
      %v1725 = vpack.c.bf16 %v1685, %v1681
      %v1726 = vpack.c.bf16 %v1686, %v1682
      %v1727 = vpack.c.bf16 %v1691, %v1687
      %v1728 = vpack.c.bf16 %v1692, %v1688
      %v1729 = vpack.c.bf16 %v1693, %v1689
      %v1730 = vpack.c.bf16 %v1694, %v1690
      %v1731 = vpack.c.bf16 %v1699, %v1695
      %v1732 = vpack.c.bf16 %v1700, %v1696
      %v1733 = vpack.c.bf16 %v1701, %v1697
      %v1734 = vpack.c.bf16 %v1702, %v1698
      %v1767 = vunpack.c.l.b16 %v1703
      %v1768 = vunpack.c.l.b16 %v1704
      %v1769 = vunpack.c.l.b16 %v1705
      %v1770 = vunpack.c.l.b16 %v1706
      %v1771 = vunpack.c.h.b16 %v1703
      %v1772 = vunpack.c.h.b16 %v1704
      %v1773 = vunpack.c.h.b16 %v1705
      %v1774 = vunpack.c.h.b16 %v1706
      %v1775 = vunpack.c.l.b16 %v1707
      %v1776 = vunpack.c.l.b16 %v1708
      %v1777 = vunpack.c.l.b16 %v1709
      %v1778 = vunpack.c.l.b16 %v1710
      %v1779 = vunpack.c.h.b16 %v1707
      %v1780 = vunpack.c.h.b16 %v1708
      %v1781 = vunpack.c.h.b16 %v1709
      %v1782 = vunpack.c.h.b16 %v1710
      %v1783 = vunpack.c.l.b16 %v1711
      %v1784 = vunpack.c.l.b16 %v1712
      %v1785 = vunpack.c.l.b16 %v1713
      %v1786 = vunpack.c.l.b16 %v1714
      %v1787 = vunpack.c.h.b16 %v1711
      %v1788 = vunpack.c.h.b16 %v1712
      %v1789 = vunpack.c.h.b16 %v1713
      %v1790 = vunpack.c.h.b16 %v1714
      %v1791 = vunpack.c.l.b16 %v1715
      %v1792 = vunpack.c.l.b16 %v1716
      %v1793 = vunpack.c.l.b16 %v1717
      %v1794 = vunpack.c.l.b16 %v1718
      %v1795 = vunpack.c.h.b16 %v1715
      %v1796 = vunpack.c.h.b16 %v1716
      %v1797 = vunpack.c.h.b16 %v1717
      %v1798 = vunpack.c.h.b16 %v1718
      %v1799 = vunpack.c.l.b16 %v1719
      %v1800 = vunpack.c.l.b16 %v1720
      %v1801 = vunpack.c.l.b16 %v1721
      %v1802 = vunpack.c.l.b16 %v1722
      %v1803 = vunpack.c.h.b16 %v1719
      %v1804 = vunpack.c.h.b16 %v1720
      %v1805 = vunpack.c.h.b16 %v1721
      %v1806 = vunpack.c.h.b16 %v1722
      %v1807 = vunpack.c.l.b16 %v1723
      %v1808 = vunpack.c.l.b16 %v1724
      %v1809 = vunpack.c.l.b16 %v1725
      %v1810 = vunpack.c.l.b16 %v1726
      %v1811 = vunpack.c.h.b16 %v1723
      %v1812 = vunpack.c.h.b16 %v1724
      %v1813 = vunpack.c.h.b16 %v1725
      %v1814 = vunpack.c.h.b16 %v1726
      %v1815 = vunpack.c.l.b16 %v1727
      %v1816 = vunpack.c.l.b16 %v1728
      %v1817 = vunpack.c.l.b16 %v1729
      %v1818 = vunpack.c.l.b16 %v1730
      %v1819 = vunpack.c.h.b16 %v1727
      %v1820 = vunpack.c.h.b16 %v1728
      %v1821 = vunpack.c.h.b16 %v1729
      %v1822 = vunpack.c.h.b16 %v1730
      %v1823 = vunpack.c.l.b16 %v1731
      %v1824 = vunpack.c.l.b16 %v1732
      %v1825 = vunpack.c.l.b16 %v1733
      %v1826 = vunpack.c.l.b16 %v1734
      %v1827 = vunpack.c.h.b16 %v1731
      %v1828 = vunpack.c.h.b16 %v1732
      %v1829 = vunpack.c.h.b16 %v1733
      %v1830 = vunpack.c.h.b16 %v1734
      %v1831 = vpack.c.b16 %v1768, %v1767
      %v1832 = vpack.c.b16 %v1770, %v1769
      %v1833 = vpack.c.b16 %v1772, %v1771
      %v1834 = vpack.c.b16 %v1774, %v1773
      %v1835 = vpack.c.b16 %v1776, %v1775
      %v1836 = vpack.c.b16 %v1778, %v1777
      %v1837 = vpack.c.b16 %v1780, %v1779
      %v1838 = vpack.c.b16 %v1782, %v1781
      %v1839 = vpack.c.b16 %v1784, %v1783
      %v1840 = vpack.c.b16 %v1786, %v1785
      %v1841 = vpack.c.b16 %v1788, %v1787
      %v1842 = vpack.c.b16 %v1790, %v1789
      %v1843 = vpack.c.b16 %v1792, %v1791
      %v1844 = vpack.c.b16 %v1794, %v1793
      %v1845 = vpack.c.b16 %v1796, %v1795
      %v1846 = vpack.c.b16 %v1798, %v1797
      %v1847 = vpack.c.b16 %v1800, %v1799
      %v1848 = vpack.c.b16 %v1802, %v1801
      %v1849 = vpack.c.b16 %v1804, %v1803
      %v1850 = vpack.c.b16 %v1806, %v1805
      %v1851 = vpack.c.b16 %v1808, %v1807
      %v1852 = vpack.c.b16 %v1810, %v1809
      %v1853 = vpack.c.b16 %v1812, %v1811
      %v1854 = vpack.c.b16 %v1814, %v1813
      %v1855 = vpack.c.b16 %v1816, %v1815
      %v1856 = vpack.c.b16 %v1818, %v1817
      %v1857 = vpack.c.b16 %v1820, %v1819
      %v1858 = vpack.c.b16 %v1822, %v1821
      %v1859 = vpack.c.b16 %v1824, %v1823
      %v1860 = vpack.c.b16 %v1826, %v1825
      %v1861 = vpack.c.b16 %v1828, %v1827
      %v1862 = vpack.c.b16 %v1830, %v1829
      %1895 = vst [vmem:[#allocation13] sm:$0xff] %v1831
      %1896 = vst [vmem:[#allocation13 + $0x8] sm:$0xff] %v1832
      %1897 = vst [vmem:[#allocation13 + $0x10] sm:$0xff] %v1833
      %1898 = vst [vmem:[#allocation13 + $0x18] sm:$0xff] %v1834
      %1899 = vst [vmem:[#allocation13 + $0x20] sm:$0xff] %v1835
      %1900 = vst [vmem:[#allocation13 + $0x28] sm:$0xff] %v1836
      %1901 = vst [vmem:[#allocation13 + $0x30] sm:$0xff] %v1837
      %1902 = vst [vmem:[#allocation13 + $0x38] sm:$0xff] %v1838
      %1903 = vst [vmem:[#allocation13 + $0x40] sm:$0xff] %v1839
      %1904 = vst [vmem:[#allocation13 + $0x48] sm:$0xff] %v1840
      %1905 = vst [vmem:[#allocation13 + $0x50] sm:$0xff] %v1841
      %1906 = vst [vmem:[#allocation13 + $0x58] sm:$0xff] %v1842
      %1907 = vst [vmem:[#allocation13 + $0x60] sm:$0xff] %v1843
      %1908 = vst [vmem:[#allocation13 + $0x68] sm:$0xff] %v1844
      %1909 = vst [vmem:[#allocation13 + $0x70] sm:$0xff] %v1845
      %1910 = vst [vmem:[#allocation13 + $0x78] sm:$0xff] %v1846
      %1911 = vst [vmem:[#allocation13 + $0x80] sm:$0xff] %v1847
      %1912 = vst [vmem:[#allocation13 + $0x88] sm:$0xff] %v1848
      %1913 = vst [vmem:[#allocation13 + $0x90] sm:$0xff] %v1849
      %1914 = vst [vmem:[#allocation13 + $0x98] sm:$0xff] %v1850
      %1915 = vst [vmem:[#allocation13 + $0xa0] sm:$0xff] %v1851
      %1916 = vst [vmem:[#allocation13 + $0xa8] sm:$0xff] %v1852
      %1917 = vst [vmem:[#allocation13 + $0xb0] sm:$0xff] %v1853
      %1918 = vst [vmem:[#allocation13 + $0xb8] sm:$0xff] %v1854
      %1919 = vst [vmem:[#allocation13 + $0xc0] sm:$0xff] %v1855
      %1920 = vst [vmem:[#allocation13 + $0xc8] sm:$0xff] %v1856
      %1921 = vst [vmem:[#allocation13 + $0xd0] sm:$0xff] %v1857
      %1922 = vst [vmem:[#allocation13 + $0xd8] sm:$0xff] %v1858
      %1923 = vst [vmem:[#allocation13 + $0xe0] sm:$0xff] %v1859
      %1924 = vst [vmem:[#allocation13 + $0xe8] sm:$0xff] %v1860
      %1925 = vst [vmem:[#allocation13 + $0xf0] sm:$0xff] %v1861
      %1926 = vst [vmem:[#allocation13 + $0xf8] sm:$0xff] %v1862
      %1927 = vst.msk [vmem:[%s7] sm:$0xff] %vm449, %v502
      %1928 = vst.msk [vmem:[%s7 + $0x8] sm:$0xff] %vm449, %v504
      %1929 = vst.msk [vmem:[%s7 + $0x10] sm:$0xff] %vm449, %v506
      %1930 = vst.msk [vmem:[%s7 + $0x18] sm:$0xff] %vm449, %v508
      %1931 = vst.msk [vmem:[%s7 + $0x20] sm:$0xff] %vm449, %v510
      %1932 = vst.msk [vmem:[%s7 + $0x28] sm:$0xff] %vm449, %v512
      %1933 = vst.msk [vmem:[%s7 + $0x30] sm:$0xff] %vm449, %v514
      %1934 = vst.msk [vmem:[%s7 + $0x38] sm:$0xff] %vm449, %v516
      %1935 = vst.msk [vmem:[%s7 + $0x40] sm:$0xff] %vm449, %v518
      %1936 = vst.msk [vmem:[%s7 + $0x48] sm:$0xff] %vm449, %v520
      %1937 = vst.msk [vmem:[%s7 + $0x50] sm:$0xff] %vm449, %v522
      %1938 = vst.msk [vmem:[%s7 + $0x58] sm:$0xff] %vm449, %v524
      %1939 = vst.msk [vmem:[%s7 + $0x60] sm:$0xff] %vm449, %v526
      %1940 = vst.msk [vmem:[%s7 + $0x68] sm:$0xff] %vm449, %v528
      %1941 = vst.msk [vmem:[%s7 + $0x70] sm:$0xff] %vm449, %v530
      %1942 = vst.msk [vmem:[%s7 + $0x78] sm:$0xff] %vm449, %v532
    $region53: #{tpu_custom_call.1} parent=1 // pred_fallthru
      _
    // Predicated region
    $region54: #{tpu_custom_call.1} parent=1 // pred_check
      _
    $region55: #{tpu_custom_call.1} parent=1 // pred_check_branch
      %1944 = sbr.rel (0) target = $region57
    $region56: #{tpu_custom_call.1} parent=1 // pred_region
      %s1946 = ssub.s32 4096, 4096
      %1947 = vsyncadd [#allocation6], %s1946
      %s1948 = sshll.u32 [#allocation13], 4
      %s1949 = int_to_ptr.vmem [resolvable:$true] %s1948
      %1954 = dma.vmem_to_hbm [thread:$0]  %s1949, 4096, %s6, [#allocation6], 256, 256, 16
    $region57: #{tpu_custom_call.1} parent=1 // pred_fallthru
      _
    // Predicated region
    $region58: #{tpu_custom_call.1} parent=1 // pred_check
      _
    $region59: #{tpu_custom_call.1} parent=1 // pred_check_branch
      %1956 = sbr.rel (0) target = $region61
    $region60: #{tpu_custom_call.1} parent=1 // pred_region
      _
    $region61: #{tpu_custom_call.1} parent=1 // pred_fallthru
      _
    // Predicated region
    $region62: #{tpu_custom_call.1} parent=1 // pred_check
      _
    $region63: #{tpu_custom_call.1} parent=1 // pred_check_branch
      %1958 = sbr.rel (0) target = $region65
    $region64: #{tpu_custom_call.1} parent=1 // pred_region
      %1959 = dma.done [#allocation6], 4096
    $region65: #{tpu_custom_call.1} parent=1 // pred_fallthru
      _
    // Predicated region
    $region66: #{tpu_custom_call.1} parent=1 // pred_check
      _
    $region67: #{tpu_custom_call.1} parent=1 // pred_check_branch
      %1961 = sbr.rel (0) target = $region69
    $region68: #{tpu_custom_call.1} parent=1 // pred_region
      _
    $region69: #{tpu_custom_call.1} parent=1 // pred_fallthru
      _
    %1962 = vsyncpa [#allocation5], 1
    %1963 = vsyncpa [#allocation8], 1
    %1964 = vsyncpa [#allocation11], 1
    %1965 = vsyncpa [#allocation6], 1

</llo_original>
